<compile_context>
chip_gen: v5e
topology: v5e:2x2
jax: 0.10.0
libtpu: 0.0.40
codegen_flags: <defaults>
</compile_context>

<pallas_src>
import functools

import jax
import jax.numpy as jnp
from jax import lax
from jax.experimental import pallas as pl
from jax.experimental.pallas import tpu as pltpu


def _mha_kernel(x_ref, w_in_ref, b_in_ref, w_out_ref, b_out_ref, o_ref,
                q_scr, ctx_scr, *,
                num_heads, head_dim, spatial_h, spatial_w, q_chunk):
    h, hd = num_heads, head_dim
    E = h * hd
    S = spatial_h * spatial_w

    # One (b, t) frame, channel-first slab: (C, H, W) -> (C, S), bf16 MXU operand.
    x = x_ref[...].reshape(E, S).astype(jnp.bfloat16)

    # Fused QKV projection in transposed form: (3E, E) @ (E, S) -> (3E, S),
    # single MXU pass, f32 accumulation, f32 bias (broadcast over the lane dim).
    qkv_t = jnp.dot(w_in_ref[...], x, preferred_element_type=jnp.float32)
    qkv_t = qkv_t + b_in_ref[...]                                   # (3E, S)

    scale = 1.0 / (hd ** 0.5)
    # Head split is a leading-dim reshape (rows e = head*hd + d), no lane
    # relayout.  Only q gets the minor (hd, S) -> (S, hd) swap so that QK^T
    # and PV below are standard batched matmuls; it is staged in VMEM scratch
    # so query chunks can be sliced with pl.ds.
    q_scr[...] = jnp.swapaxes((qkv_t[0:E] * scale).reshape(h, hd, S),
                              1, 2).astype(jnp.bfloat16)            # (h, S, hd)
    k_t = qkv_t[E:2 * E].reshape(h, hd, S).astype(jnp.bfloat16)     # (h, hd, S)
    v_t = qkv_t[2 * E:3 * E].reshape(h, hd, S).astype(jnp.bfloat16)  # (h, hd, S)

    n_chunks = S // q_chunk

    def attend(i):
        q0 = i * q_chunk
        if not isinstance(q0, int):
            q0 = pl.multiple_of(q0, q_chunk)
        q_c = q_scr[:, pl.ds(q0, q_chunk), :]                       # (h, Qc, hd)
        # NOTE: hd < 256 underfills the v6e/v7x MXU contraction here; the QKV
        # and output projections (contraction = E) are the well-fed matmuls.
        s = jnp.einsum('hqd,hdk->hqk', q_c, k_t,
                       preferred_element_type=jnp.float32)          # (h, Qc, S) f32
        s = s - s.max(axis=-1, keepdims=True)
        p = jnp.exp(s)
        # Full key dim is present per chunk -> exact softmax, exact reciprocal
        # (only (h, Qc) divides; negligible cost, no approx-rcp drift at big S).
        p = p * (1.0 / p.sum(axis=-1, keepdims=True))
        ctx_scr[:, pl.ds(q0, q_chunk), :] = jnp.einsum(
            'hqk,hdk->hqd', p.astype(jnp.bfloat16), v_t,
            preferred_element_type=jnp.float32)                     # (h, Qc, hd)

    if n_chunks == 1:
        attend(0)
    else:
        def body(i, carry):
            attend(i)
            return carry
        lax.fori_loop(0, n_chunks, body, 0, unroll=n_chunks <= 4)

    # Heads back to channels (channel-first): (h, S, hd) -> (E, S), then one
    # big output projection out^T = W_out @ ctx^T, and store in NCTHW layout.
    ctx_t = jnp.swapaxes(ctx_scr[...], 1, 2).reshape(E, S).astype(jnp.bfloat16)
    out_t = jnp.dot(w_out_ref[...], ctx_t, preferred_element_type=jnp.float32)
    out_t = out_t + b_out_ref[...]                                  # (E, 1) bcast
    o_ref[...] = out_t.reshape(E, spatial_h, spatial_w).astype(o_ref.dtype)


def _tpu_vmem_capacity_bytes():
    try:
        return int(pltpu.get_tpu_info().vmem_capacity_bytes)
    except Exception:
        return 64 * 1024 * 1024          # conservative (v7x per-TC VMEM)


def _vmem_limit_bytes(capacity):
    # ~96 MiB on 128 MiB chips (v5e/v6e), ~48 MiB on 64 MiB chips (v7x),
    # always leaving headroom for compiler-internal scratch.
    return max(32 * 1024 * 1024, min(capacity * 3 // 4, 112 * 1024 * 1024))


def _pick_q_chunk(S, num_heads, budget_bytes):
    """Largest divisor Qc of S such that the f32 score slab (heads, Qc, S)
    stays within budget_bytes (generation-aware flash-style query tiling)."""
    target = max(1, min(S, budget_bytes // max(1, 4 * num_heads * S)))
    divisors = [d for d in range(1, S + 1) if S % d == 0 and d <= target]
    return max(divisors) if divisors else 1


def spatial_multihead_attention(x, params, *, num_heads, q_chunk=None):
    """x: (B, C, T, H, W); params mirror nn.MultiheadAttention; returns same shape."""
    B, C, T, H, W = x.shape
    E = C
    assert E % num_heads == 0
    head_dim = E // num_heads
    S = H * W

    in_w, in_b, out_w, out_b = params              # (3E,E), (3E,), (E,E), (E,)
    w_in = in_w.astype(jnp.bfloat16)               # bf16 MXU operands, fetched once
    w_out = out_w.astype(jnp.bfloat16)
    b_in = in_b.reshape(3 * E, 1).astype(jnp.float32)
    b_out = out_b.reshape(E, 1).astype(jnp.float32)

    vmem_cap = _tpu_vmem_capacity_bytes()
    if q_chunk is None:
        q_chunk = _pick_q_chunk(S, num_heads, budget_bytes=vmem_cap // 8)
    assert S % q_chunk == 0

    kernel = functools.partial(
        _mha_kernel, num_heads=num_heads, head_dim=head_dim,
        spatial_h=H, spatial_w=W, q_chunk=q_chunk)

    # Grid over (B, T): one spatial frame per step, both axes independent
    # (parallel -> megacore sharding on v7x).  Blocks keep the last two dims
    # (H, W) at full extent so every BlockSpec satisfies the (8,128)/full-dim
    # rule for any input shape, and no wrapper-side permute/copy is needed.
    out = pl.pallas_call(
        kernel,
        out_shape=jax.ShapeDtypeStruct((B, C, T, H, W), x.dtype),
        grid_spec=pltpu.PrefetchScalarGridSpec(
            num_scalar_prefetch=0,
            grid=(B, T),
            in_specs=[
                pl.BlockSpec((None, C, None, H, W), lambda b, t: (b, 0, t, 0, 0)),
                pl.BlockSpec((3 * E, E), lambda b, t: (0, 0)),     # fused W_in (3E,E)
                pl.BlockSpec((3 * E, 1), lambda b, t: (0, 0)),     # fused b_in
                pl.BlockSpec((E, E), lambda b, t: (0, 0)),         # W_out (E,E)
                pl.BlockSpec((E, 1), lambda b, t: (0, 0)),         # b_out
            ],
            out_specs=pl.BlockSpec((None, C, None, H, W),
                                   lambda b, t: (b, 0, t, 0, 0)),
            scratch_shapes=[
                pltpu.VMEM((num_heads, S, head_dim), jnp.bfloat16),  # q, query-sliceable
                pltpu.VMEM((num_heads, S, head_dim), jnp.float32),   # context accumulator
            ],
        ),
        compiler_params=pltpu.CompilerParams(
            dimension_semantics=("parallel", "parallel"),
            vmem_limit_bytes=_vmem_limit_bytes(vmem_cap),
        ),
    )(x, w_in, b_in, w_out, b_out)
    return out


def _init_params(key, embed_dim):
    """Deterministic synthetic parameters in nn.MultiheadAttention layout."""
    E = embed_dim
    k1, k2, k3, k4 = jax.random.split(key, 4)
    in_w = jax.random.normal(k1, (3 * E, E), jnp.float32) * 0.05    # in_proj_weight
    in_b = jax.random.normal(k2, (3 * E,), jnp.float32) * 0.05      # in_proj_bias
    out_w = jax.random.normal(k3, (E, E), jnp.float32) * 0.05       # out_proj.weight
    out_b = jax.random.normal(k4, (E,), jnp.float32) * 0.05         # out_proj.bias
    return (in_w, in_b, out_w, out_b)


def _reference(x, params, *, num_heads):
    """Pure-JAX f32 reference of the PyTorch forward."""
    B, C, T, H, W = x.shape
    E = C
    hd = E // num_heads
    in_w, in_b, out_w, out_b = params
    xr = jnp.transpose(x, (0, 2, 3, 4, 1)).reshape(B * T, H * W, C)
    N, S, _ = xr.shape
    qkv = xr @ in_w.T + in_b
    q, k, v = qkv[..., :E], qkv[..., E:2 * E], qkv[..., 2 * E:]
    q = q.reshape(N, S, num_heads, hd).transpose(0, 2, 1, 3)
    k = k.reshape(N, S, num_heads, hd).transpose(0, 2, 1, 3)
    v = v.reshape(N, S, num_heads, hd).transpose(0, 2, 1, 3)
    s = jnp.einsum("nhqd,nhkd->nhqk", q, k) / (hd ** 0.5)
    p = jax.nn.softmax(s, axis=-1)
    o = jnp.einsum("nhqk,nhkd->nhqd", p, v).transpose(0, 2, 1, 3).reshape(N, S, E)
    o = o @ out_w.T + out_b
    return jnp.transpose(o.reshape(B, T, H, W, C), (0, 4, 1, 2, 3))


if __name__ == "__main__":
    # Small shapes: B=2, C(embed)=32, T=2, H=W=4 -> grid (2,2), S=H*W=16.
    B, C, T, H, W = 2, 32, 2, 4, 4
    NUM_HEADS = 4

    key = jax.random.PRNGKey(0)
    kx, kp = jax.random.split(key)
    x = jax.random.normal(kx, (B, C, T, H, W), jnp.float32)
    params = _init_params(kp, C)

    ref = _reference(x, params, num_heads=NUM_HEADS)

    # Default path (single query chunk: Qc == S).
    out = spatial_multihead_attention(x, params, num_heads=NUM_HEADS)
    out = jax.block_until_ready(out)
    assert out.shape == (B, C, T, H, W)
    assert jnp.allclose(out, ref, atol=2e-2, rtol=2e-2)

    # Forced query-chunked path (2 chunks) to exercise the fori_loop tiling.
    out_chunked = spatial_multihead_attention(x, params, num_heads=NUM_HEADS,
                                              q_chunk=8)
    out_chunked = jax.block_until_ready(out_chunked)
    assert jnp.allclose(out_chunked, ref, atol=2e-2, rtol=2e-2)

    print("KERNEL_OK")
</pallas_src>

<mosaic_0001>
module attributes {stable_mosaic.version = 11 : i64} {
  func.func @_mha_kernel(%arg0: i32, %arg1: i32, %arg2: memref<1x32x1x4x4xf32, #tpu.memory_space<vmem>>, %arg3: memref<96x32xbf16, #tpu.memory_space<vmem>>, %arg4: memref<96x1xf32, #tpu.memory_space<vmem>>, %arg5: memref<32x32xbf16, #tpu.memory_space<vmem>>, %arg6: memref<32x1xf32, #tpu.memory_space<vmem>>, %arg7: memref<1x32x1x4x4xf32, #tpu.memory_space<vmem>>, %arg8: memref<4x16x8xbf16, #tpu.memory_space<vmem>>, %arg9: memref<4x16x8xf32, #tpu.memory_space<vmem>>) attributes {dimension_semantics = [#tpu.dimension_semantics<parallel>, #tpu.dimension_semantics<parallel>], iteration_bounds = array<i64: 2, 2>, scalar_prefetch = 0 : i64, scratch_operands = 2 : i64, tpu.core_type = #tpu.core_type<tc>, window_params = [{transform_indices = @transform_0, window_bounds = array<i64: 1, 32, 1, 4, 4>}, {pipeline_mode = #tpu.pipeline_mode<synchronous>, transform_indices = @transform_1, window_bounds = array<i64: 96, 32>}, {pipeline_mode = #tpu.pipeline_mode<synchronous>, transform_indices = @transform_2, window_bounds = array<i64: 96, 1>}, {pipeline_mode = #tpu.pipeline_mode<synchronous>, transform_indices = @transform_3, window_bounds = array<i64: 32, 32>}, {pipeline_mode = #tpu.pipeline_mode<synchronous>, transform_indices = @transform_4, window_bounds = array<i64: 32, 1>}, {transform_indices = @transform_5, window_bounds = array<i64: 1, 32, 1, 4, 4>}]} {
    %c0 = arith.constant 0 : index
    %c0_0 = arith.constant 0 : index
    %c0_1 = arith.constant 0 : index
    %c0_2 = arith.constant 0 : index
    %c0_3 = arith.constant 0 : index
    %0 = vector.load %arg2[%c0, %c0_0, %c0_1, %c0_2, %c0_3] : memref<1x32x1x4x4xf32, #tpu.memory_space<vmem>>, vector<1x32x1x4x4xf32>
    %1 = vector.shape_cast %0 : vector<1x32x1x4x4xf32> to vector<32x4x4xf32>
    %2 = vector.shape_cast %1 : vector<32x4x4xf32> to vector<32x16xf32>
    %3 = arith.truncf %2 : vector<32x16xf32> to vector<32x16xbf16>
    %c0_4 = arith.constant 0 : index
    %c0_5 = arith.constant 0 : index
    %4 = vector.load %arg3[%c0_4, %c0_5] : memref<96x32xbf16, #tpu.memory_space<vmem>>, vector<96x32xbf16>
    %cst = arith.constant dense<0.000000e+00> : vector<96x16xf32>
    %5 = tpu.matmul %4, %3, %cst {dimension_numbers = #tpu.dot_dimension_numbers<[1], [0], [0], [1], [0, 0, 1, 1], [], []>} : vector<96x32xbf16>, vector<32x16xbf16>, vector<96x16xf32> -> vector<96x16xf32>
    %c0_6 = arith.constant 0 : index
    %c0_7 = arith.constant 0 : index
    %6 = vector.load %arg4[%c0_6, %c0_7] : memref<96x1xf32, #tpu.memory_space<vmem>>, vector<96x1xf32>
    %7 = vector.broadcast %6 : vector<96x1xf32> to vector<96x16xf32>
    %8 = arith.addf %5, %7 : vector<96x16xf32>
    %9 = vector.extract_strided_slice %8 {offsets = [0, 0], sizes = [32, 16], strides = [1, 1]} : vector<96x16xf32> to vector<32x16xf32>
    %cst_8 = arith.constant 0.353553385 : f32
    %10 = vector.broadcast %cst_8 : f32 to vector<32x16xf32>
    %11 = arith.mulf %9, %10 : vector<32x16xf32>
    %12 = vector.shape_cast %11 : vector<32x16xf32> to vector<4x8x16xf32>
    %13 = tpu.transpose %12, [0, 2, 1] : vector<4x8x16xf32> -> vector<4x16x8xf32>
    %14 = arith.truncf %13 : vector<4x16x8xf32> to vector<4x16x8xbf16>
    %c0_9 = arith.constant 0 : index
    %c0_10 = arith.constant 0 : index
    %c0_11 = arith.constant 0 : index
    %15 = vector.load %arg8[%c0_9, %c0_10, %c0_11] : memref<4x16x8xbf16, #tpu.memory_space<vmem>>, vector<4x16x8xbf16>
    tpu.vector_store %arg8[%c0_9, %c0_10, %c0_11], %14 {strides = array<i32>} : memref<4x16x8xbf16, #tpu.memory_space<vmem>>, vector<4x16x8xbf16>,
    %16 = vector.extract_strided_slice %8 {offsets = [32, 0], sizes = [32, 16], strides = [1, 1]} : vector<96x16xf32> to vector<32x16xf32>
    %17 = vector.shape_cast %16 : vector<32x16xf32> to vector<4x8x16xf32>
    %18 = arith.truncf %17 : vector<4x8x16xf32> to vector<4x8x16xbf16>
    %19 = vector.extract_strided_slice %8 {offsets = [64, 0], sizes = [32, 16], strides = [1, 1]} : vector<96x16xf32> to vector<32x16xf32>
    %20 = vector.shape_cast %19 : vector<32x16xf32> to vector<4x8x16xf32>
    %21 = arith.truncf %20 : vector<4x8x16xf32> to vector<4x8x16xbf16>
    %c0_12 = arith.constant 0 : index
    %c0_13 = arith.constant 0 : index
    %c0_14 = arith.constant 0 : index
    %22 = vector.load %arg8[%c0_12, %c0_13, %c0_14] : memref<4x16x8xbf16, #tpu.memory_space<vmem>>, vector<4x16x8xbf16>
    "tpu.trace_start"() <{level = 10 : i32, message = "hqd,hdk->hqk"}> : () -> ()
    %cst_15 = arith.constant dense<0.000000e+00> : vector<4x16x16xf32>
    %23 = tpu.matmul %22, %18, %cst_15 {dimension_numbers = #tpu.dot_dimension_numbers<[2], [1], [1], [2], [0, 0, 0, 1, 1, 2], [0], [0]>} : vector<4x16x8xbf16>, vector<4x8x16xbf16>, vector<4x16x16xf32> -> vector<4x16x16xf32>
    "tpu.trace_stop"() : () -> ()
    %cst_16 = arith.constant dense<0xFF800000> : vector<4x16xf32>
    %24 = vector.multi_reduction <maximumf>, %23, %cst_16 [2] : vector<4x16x16xf32> to vector<4x16xf32>
    %25 = vector.shape_cast %24 : vector<4x16xf32> to vector<4x16x1xf32>
    %26 = vector.broadcast %25 : vector<4x16x1xf32> to vector<4x16x16xf32>
    %27 = arith.subf %23, %26 : vector<4x16x16xf32>
    %28 = math.exp %27 : vector<4x16x16xf32>
    %cst_17 = arith.constant dense<0.000000e+00> : vector<4x16xf32>
    %29 = vector.multi_reduction <add>, %28, %cst_17 [2] : vector<4x16x16xf32> to vector<4x16xf32>
    %30 = vector.shape_cast %29 : vector<4x16xf32> to vector<4x16x1xf32>
    %cst_18 = arith.constant 1.000000e+00 : f32
    %31 = vector.broadcast %cst_18 : f32 to vector<4x16x1xf32>
    %32 = arith.divf %31, %30 : vector<4x16x1xf32>
    %33 = vector.broadcast %32 : vector<4x16x1xf32> to vector<4x16x16xf32>
    %34 = arith.mulf %28, %33 : vector<4x16x16xf32>
    %35 = arith.truncf %34 : vector<4x16x16xf32> to vector<4x16x16xbf16>
    "tpu.trace_start"() <{level = 10 : i32, message = "hqk,hdk->hqd"}> : () -> ()
    %cst_19 = arith.constant dense<0.000000e+00> : vector<4x16x8xf32>
    %36 = tpu.matmul %35, %21, %cst_19 {dimension_numbers = #tpu.dot_dimension_numbers<[2], [2], [1], [1], [0, 0, 0, 1, 1, 1], [0], [0]>} : vector<4x16x16xbf16>, vector<4x8x16xbf16>, vector<4x16x8xf32> -> vector<4x16x8xf32>
    "tpu.trace_stop"() : () -> ()
    %c0_20 = arith.constant 0 : index
    %c0_21 = arith.constant 0 : index
    %c0_22 = arith.constant 0 : index
    %37 = vector.load %arg9[%c0_20, %c0_21, %c0_22] : memref<4x16x8xf32, #tpu.memory_space<vmem>>, vector<4x16x8xf32>
    tpu.vector_store %arg9[%c0_20, %c0_21, %c0_22], %36 {strides = array<i32>} : memref<4x16x8xf32, #tpu.memory_space<vmem>>, vector<4x16x8xf32>,
    %c0_23 = arith.constant 0 : index
    %c0_24 = arith.constant 0 : index
    %c0_25 = arith.constant 0 : index
    %38 = vector.load %arg9[%c0_23, %c0_24, %c0_25] : memref<4x16x8xf32, #tpu.memory_space<vmem>>, vector<4x16x8xf32>
    %39 = tpu.transpose %38, [0, 2, 1] : vector<4x16x8xf32> -> vector<4x8x16xf32>
    %40 = vector.shape_cast %39 : vector<4x8x16xf32> to vector<32x16xf32>
    %41 = arith.truncf %40 : vector<32x16xf32> to vector<32x16xbf16>
    %c0_26 = arith.constant 0 : index
    %c0_27 = arith.constant 0 : index
    %42 = vector.load %arg5[%c0_26, %c0_27] : memref<32x32xbf16, #tpu.memory_space<vmem>>, vector<32x32xbf16>
    %cst_28 = arith.constant dense<0.000000e+00> : vector<32x16xf32>
    %43 = tpu.matmul %42, %41, %cst_28 {dimension_numbers = #tpu.dot_dimension_numbers<[1], [0], [0], [1], [0, 0, 1, 1], [], []>} : vector<32x32xbf16>, vector<32x16xbf16>, vector<32x16xf32> -> vector<32x16xf32>
    %c0_29 = arith.constant 0 : index
    %c0_30 = arith.constant 0 : index
    %44 = vector.load %arg6[%c0_29, %c0_30] : memref<32x1xf32, #tpu.memory_space<vmem>>, vector<32x1xf32>
    %45 = vector.broadcast %44 : vector<32x1xf32> to vector<32x16xf32>
    %46 = arith.addf %43, %45 : vector<32x16xf32>
    %47 = vector.shape_cast %46 : vector<32x16xf32> to vector<32x4x4xf32>
    %c0_31 = arith.constant 0 : index
    %c0_32 = arith.constant 0 : index
    %c0_33 = arith.constant 0 : index
    %c0_34 = arith.constant 0 : index
    %c0_35 = arith.constant 0 : index
    %48 = vector.load %arg7[%c0_31, %c0_32, %c0_33, %c0_34, %c0_35] : memref<1x32x1x4x4xf32, #tpu.memory_space<vmem>>, vector<1x32x1x4x4xf32>
    %49 = vector.shape_cast %48 : vector<1x32x1x4x4xf32> to vector<32x4x4xf32>
    %50 = vector.shape_cast %47 : vector<32x4x4xf32> to vector<1x32x1x4x4xf32>
    tpu.vector_store %arg7[%c0_31, %c0_32, %c0_33, %c0_34, %c0_35], %50 {strides = array<i32>} : memref<1x32x1x4x4xf32, #tpu.memory_space<vmem>>, vector<1x32x1x4x4xf32>,
    return
  }
  func.func @transform_0(%arg0: i32, %arg1: i32) -> (i32, i32, i32, i32, i32) {
    %c0_i32 = arith.constant 0 : i32
    %c0_i32_0 = arith.constant 0 : i32
    %c0_i32_1 = arith.constant 0 : i32
    %c0_i32_2 = arith.constant 0 : i32
    return %arg0, %c0_i32, %arg1, %c0_i32_0, %c0_i32_1 : i32, i32, i32, i32, i32
  }
  func.func @transform_1(%arg0: i32, %arg1: i32) -> (i32, i32) {
    %c0_i32 = arith.constant 0 : i32
    %c0_i32_0 = arith.constant 0 : i32
    %c0_i32_1 = arith.constant 0 : i32
    return %c0_i32, %c0_i32_0 : i32, i32
  }
  func.func @transform_2(%arg0: i32, %arg1: i32) -> (i32, i32) {
    %c0_i32 = arith.constant 0 : i32
    %c0_i32_0 = arith.constant 0 : i32
    %c0_i32_1 = arith.constant 0 : i32
    return %c0_i32, %c0_i32_0 : i32, i32
  }
  func.func @transform_3(%arg0: i32, %arg1: i32) -> (i32, i32) {
    %c0_i32 = arith.constant 0 : i32
    %c0_i32_0 = arith.constant 0 : i32
    %c0_i32_1 = arith.constant 0 : i32
    return %c0_i32, %c0_i32_0 : i32, i32
  }
  func.func @transform_4(%arg0: i32, %arg1: i32) -> (i32, i32) {
    %c0_i32 = arith.constant 0 : i32
    %c0_i32_0 = arith.constant 0 : i32
    %c0_i32_1 = arith.constant 0 : i32
    return %c0_i32, %c0_i32_0 : i32, i32
  }
  func.func @transform_5(%arg0: i32, %arg1: i32) -> (i32, i32, i32, i32, i32) {
    %c0_i32 = arith.constant 0 : i32
    %c0_i32_0 = arith.constant 0 : i32
    %c0_i32_1 = arith.constant 0 : i32
    %c0_i32_2 = arith.constant 0 : i32
    return %arg0, %c0_i32, %arg1, %c0_i32_0, %c0_i32_1 : i32, i32, i32, i32, i32
  }
}

</mosaic_0001>

<llo_original>
// kernel: tpu_custom_call.1
$region0: #{tpu_custom_call.1}
  #allocation0 [shape = 'u32[]', space=smem, size = 0x4, offset = 0x4, fixed_abs, tag = 'smem constant byte address 0x4 - core index']
  #allocation1 [shape = 'u32[72,128]{1,0:T(1,128)}', space=vmem, size = 0x9000, scoped, tag = 'internal scratch']
  #allocation2 [shape = 'bf16[4,16,8]{2,1,0:T(8,128)(2,1)}', space=vmem, size = 0x4000, scoped, tag = 'scratch operand']
  #allocation3 [shape = 'f32[4,16,8]{2,1,0:T(8,128)}', space=vmem, size = 0x8000, scoped, tag = 'scratch operand']
  %s0 = inlined_call_operand.vmem [shape: f32[2,32,2,4,4], index: 0, kind: input, shape index: {}]
  %s1 = inlined_call_operand.vmem [shape: bf16[96,32], index: 1, kind: input, shape index: {}]
  %s2 = inlined_call_operand.vmem [shape: f32[96,1], index: 2, kind: input, shape index: {}]
  %s3 = inlined_call_operand.vmem [shape: bf16[32,32], index: 3, kind: input, shape index: {}]
  %s4 = inlined_call_operand.vmem [shape: f32[32,1], index: 4, kind: input, shape index: {}]
  %s5 = inlined_call_operand.vmem [shape: f32[2,32,2,4,4], index: 5, kind: output, shape index: {}]
  %s6 = sld [smem:[#allocation0]]
  $region131: #{tpu_custom_call.1} parent=0
    _
  %s8 = ssub.s32 1, %s6
  %s9 = scalar_select 0, %s8, %s6
  $region1: #{tpu_custom_call.1} parent=0
    #allocation4 [shape = 'u8[131072]{0}', space=vmem, size = 0x20000, scoped, tag = 'input window, operand 0']
    #allocation5 [shape = 'u8[131072]{0}', space=vmem, size = 0x20000, scoped, tag = 'output window, operand 0']
    loop: start=0, step=1, limit=6
    $region2: #{tpu_custom_call.1} parent=1 // loop_pre_header
      _
    $region3: #{tpu_custom_call.1} parent=1 // loop_header
      %s11 = sphi 0, %s15
      %p12 = scmp.ge.s32.totalorder %s11, 6
      %s18 = sphi 0, %s30
      %s19 = sphi 0, %s26
      %s20 = sphi 0, %s18
      %s21 = sphi 0, %s19
      %s22 = sphi 0, %s20
      %s23 = sphi 0, %s21
      %s35 = sphi 0, %s37
      %s38 = sphi 0, %s35
      %s39 = sphi 0, %s38
      %s55 = sphi 0, %s39
      %s59 = sphi 0, %s59
      %s61 = sphi 0, %s59
      %s62 = sphi 0, %s61
      %s76 = sphi 0, %s62
      %s80 = sphi 0, %s80
      %s82 = sphi 0, %s80
      %s83 = sphi 0, %s82
      %s97 = sphi 0, %s83
      %s101 = sphi 0, %s101
      %s103 = sphi 0, %s101
      %s104 = sphi 0, %s103
      %s118 = sphi 0, %s104
      %s122 = sphi 0, %s122
      %s124 = sphi 0, %s122
      %s125 = sphi 0, %s124
      %s139 = sphi 0, %s125
      %s147 = sphi 0, %s149
      %s150 = sphi 0, %s147
      %s151 = sphi 0, %s150
      %s167 = sphi 0, %s151
    $region4: #{tpu_custom_call.1} parent=1 // loop_header_branch
      %14 = sbr.rel (%p12) target = $region8
    $region5: #{tpu_custom_call.1} parent=1 // loop_body
      %s16 = ssub.s32 %s11, 1
      %s17 = ssub.s32 %s11, 2
      %s24 = sadd.s32 1, %s19
      %p25 = scmp.ge.s32.totalorder %s24, 2
      %s26 = scalar_select %p25, 0, %s24
      %s27 = sadd.s32 1, %s18
      %s28 = scalar_select %p25, %s27, %s18
      %p29 = scmp.ge.s32.totalorder %s28, 2
      %s30 = scalar_select %p29, 0, %s28
      %s31 = ssub.s32 %s18, %s30
      %s32 = ssub.s32 %s19, %s26
      %s33 = sor.u32 %s31, %s32
      %p34 = scmp.eq.s32.totalorder %s33, 0
      %s36 = sadd.s32 %s35, 1
      %s37 = scalar_select %p34, %s35, %s36
      %p40 = pneg %p34
      %p41 = scmp.eq.s32.totalorder %s11, 3
      %p42 = por %p40, %p41
      %p43 = scmp.ne.s32.totalorder %s35, %s38
      %p44 = scmp.eq.s32.totalorder %s11, 0
      %p45 = por %p43, %p44
      %p46 = scmp.ne.s32.totalorder %s35, %s38
      %p47 = scmp.eq.s32.totalorder %s16, 3
      %p48 = por %p46, %p47
      %p49 = scmp.ne.s32.totalorder %s38, %s39
      %p50 = scmp.eq.s32.totalorder %s16, 0
      %p51 = por %p49, %p50
      %p52 = scmp.ne.s32.totalorder %s38, %s39
      %p53 = scmp.eq.s32.totalorder %s17, 3
      %p54 = por %p52, %p53
      %p56 = scmp.ne.s32.totalorder %s39, %s55
      %p57 = scmp.eq.s32.totalorder %s17, 0
      %p58 = por %p56, %p57
      %s60 = sadd.s32 %s59, 1
      %p63 = scmp.eq.s32.totalorder %s11, 3
      %p64 = scmp.ne.s32.totalorder %s59, %s61
      %p65 = scmp.eq.s32.totalorder %s11, 0
      %p66 = por %p64, %p65
      %p67 = scmp.ne.s32.totalorder %s59, %s61
      %p68 = scmp.eq.s32.totalorder %s16, 3
      %p69 = por %p67, %p68
      %p70 = scmp.ne.s32.totalorder %s61, %s62
      %p71 = scmp.eq.s32.totalorder %s16, 0
      %p72 = por %p70, %p71
      %p73 = scmp.ne.s32.totalorder %s61, %s62
      %p74 = scmp.eq.s32.totalorder %s17, 3
      %p75 = por %p73, %p74
      %p77 = scmp.ne.s32.totalorder %s62, %s76
      %p78 = scmp.eq.s32.totalorder %s17, 0
      %p79 = por %p77, %p78
      %s81 = sadd.s32 %s80, 1
      %p84 = scmp.eq.s32.totalorder %s11, 3
      %p85 = scmp.ne.s32.totalorder %s80, %s82
      %p86 = scmp.eq.s32.totalorder %s11, 0
      %p87 = por %p85, %p86
      %p88 = scmp.ne.s32.totalorder %s80, %s82
      %p89 = scmp.eq.s32.totalorder %s16, 3
      %p90 = por %p88, %p89
      %p91 = scmp.ne.s32.totalorder %s82, %s83
      %p92 = scmp.eq.s32.totalorder %s16, 0
      %p93 = por %p91, %p92
      %p94 = scmp.ne.s32.totalorder %s82, %s83
      %p95 = scmp.eq.s32.totalorder %s17, 3
      %p96 = por %p94, %p95
      %p98 = scmp.ne.s32.totalorder %s83, %s97
      %p99 = scmp.eq.s32.totalorder %s17, 0
      %p100 = por %p98, %p99
      %s102 = sadd.s32 %s101, 1
      %p105 = scmp.eq.s32.totalorder %s11, 3
      %p106 = scmp.ne.s32.totalorder %s101, %s103
      %p107 = scmp.eq.s32.totalorder %s11, 0
      %p108 = por %p106, %p107
      %p109 = scmp.ne.s32.totalorder %s101, %s103
      %p110 = scmp.eq.s32.totalorder %s16, 3
      %p111 = por %p109, %p110
      %p112 = scmp.ne.s32.totalorder %s103, %s104
      %p113 = scmp.eq.s32.totalorder %s16, 0
      %p114 = por %p112, %p113
      %p115 = scmp.ne.s32.totalorder %s103, %s104
      %p116 = scmp.eq.s32.totalorder %s17, 3
      %p117 = por %p115, %p116
      %p119 = scmp.ne.s32.totalorder %s104, %s118
      %p120 = scmp.eq.s32.totalorder %s17, 0
      %p121 = por %p119, %p120
      %s123 = sadd.s32 %s122, 1
      %p126 = scmp.eq.s32.totalorder %s11, 3
      %p127 = scmp.ne.s32.totalorder %s122, %s124
      %p128 = scmp.eq.s32.totalorder %s11, 0
      %p129 = por %p127, %p128
      %p130 = scmp.ne.s32.totalorder %s122, %s124
      %p131 = scmp.eq.s32.totalorder %s16, 3
      %p132 = por %p130, %p131
      %p133 = scmp.ne.s32.totalorder %s124, %s125
      %p134 = scmp.eq.s32.totalorder %s16, 0
      %p135 = por %p133, %p134
      %p136 = scmp.ne.s32.totalorder %s124, %s125
      %p137 = scmp.eq.s32.totalorder %s17, 3
      %p138 = por %p136, %p137
      %p140 = scmp.ne.s32.totalorder %s125, %s139
      %p141 = scmp.eq.s32.totalorder %s17, 0
      %p142 = por %p140, %p141
      %s143 = ssub.s32 %s18, %s30
      %s144 = ssub.s32 %s19, %s26
      %s145 = sor.u32 %s143, %s144
      %p146 = scmp.eq.s32.totalorder %s145, 0
      %s148 = sadd.s32 %s147, 1
      %s149 = scalar_select %p146, %s147, %s148
      %p152 = pneg %p146
      %p153 = scmp.eq.s32.totalorder %s11, 3
      %p154 = por %p152, %p153
      %p155 = scmp.ne.s32.totalorder %s147, %s150
      %p156 = scmp.eq.s32.totalorder %s11, 0
      %p157 = por %p155, %p156
      %p158 = scmp.ne.s32.totalorder %s147, %s150
      %p159 = scmp.eq.s32.totalorder %s16, 3
      %p160 = por %p158, %p159
      %p161 = scmp.ne.s32.totalorder %s150, %s151
      %p162 = scmp.eq.s32.totalorder %s16, 0
      %p163 = por %p161, %p162
      %p164 = scmp.ne.s32.totalorder %s150, %s151
      %p165 = scmp.eq.s32.totalorder %s17, 3
      %p166 = por %p164, %p165
      %p168 = scmp.ne.s32.totalorder %s151, %s167
      %p169 = scmp.eq.s32.totalorder %s17, 0
      %p170 = por %p168, %p169
      %p171 = scmp.le.s32.totalorder 1, %s11
      %p172 = scmp.lt.s32.totalorder %s11, 5
      %p173 = pnand %p171, %p172
      %p174 = pneg %p173
      // Predicated region
      $region9: #{tpu_custom_call.1} parent=5 // pred_check
        _
      $region10: #{tpu_custom_call.1} parent=5 // pred_check_branch
        %176 = sbr.rel (%p173) target = $region12
      $region11: #{tpu_custom_call.1} parent=5 // pred_region
        %s177 = ssub.s32 %s11, 1
        // Predicated region
        $region13: #{tpu_custom_call.1} parent=11 // pred_check
          %p178 = pneg %p72
        $region14: #{tpu_custom_call.1} parent=11 // pred_check_branch
          %180 = sbr.rel (%p178) target = $region16
        $region15: #{tpu_custom_call.1} parent=11 // pred_region
          _
        $region16: #{tpu_custom_call.1} parent=11 // pred_fallthru
          _
        // Predicated region
        $region17: #{tpu_custom_call.1} parent=11 // pred_check
          %p181 = pneg %p93
        $region18: #{tpu_custom_call.1} parent=11 // pred_check_branch
          %183 = sbr.rel (%p181) target = $region20
        $region19: #{tpu_custom_call.1} parent=11 // pred_region
          _
        $region20: #{tpu_custom_call.1} parent=11 // pred_fallthru
          _
        // Predicated region
        $region21: #{tpu_custom_call.1} parent=11 // pred_check
          %p184 = pneg %p114
        $region22: #{tpu_custom_call.1} parent=11 // pred_check_branch
          %186 = sbr.rel (%p184) target = $region24
        $region23: #{tpu_custom_call.1} parent=11 // pred_region
          _
        $region24: #{tpu_custom_call.1} parent=11 // pred_fallthru
          _
        // Predicated region
        $region25: #{tpu_custom_call.1} parent=11 // pred_check
          %p187 = pneg %p135
        $region26: #{tpu_custom_call.1} parent=11 // pred_check_branch
          %189 = sbr.rel (%p187) target = $region28
        $region27: #{tpu_custom_call.1} parent=11 // pred_region
          _
        $region28: #{tpu_custom_call.1} parent=11 // pred_fallthru
          _
      $region12: #{tpu_custom_call.1} parent=5 // pred_fallthru
        _
      %p190 = scmp.lt.s32.totalorder %s11, 4
      // Predicated region
      $region29: #{tpu_custom_call.1} parent=5 // pred_check
        %p191 = pneg %p190
      $region30: #{tpu_custom_call.1} parent=5 // pred_check_branch
        %193 = sbr.rel (%p191) target = $region32
      $region31: #{tpu_custom_call.1} parent=5 // pred_region
        // Predicated region
        $region33: #{tpu_custom_call.1} parent=31 // pred_check
          %p194 = pneg %p45
        $region34: #{tpu_custom_call.1} parent=31 // pred_check_branch
          %196 = sbr.rel (%p194) target = $region36
        $region35: #{tpu_custom_call.1} parent=31 // pred_region
          %s197 = sand.u32 %s35, 1
          %s198 = sand.u32 %s35, 1
          %s199 = smul.addr %s198, 128
          %s200 = scalar_lea.vmem [#allocation4], %s199
          %s201 = smul.addr %s18, 64
          %s202 = sadd.s32 %s19, %s201
          %s203 = smul.addr %s202, 4
          %s204 = scalar_lea.vmem %s0, %s203
          // Predicated region
          $region37: #{tpu_custom_call.1} parent=35 // pred_check
            _
          $region38: #{tpu_custom_call.1} parent=35 // pred_check_branch
            %206 = sbr.rel (0) target = $region40
          $region39: #{tpu_custom_call.1} parent=35 // pred_region
            // Predicated region
            $region41: #{tpu_custom_call.1} parent=39 // pred_check
              _
            $region42: #{tpu_custom_call.1} parent=39 // pred_check_branch
              %208 = sbr.rel target = $region44
            $region43: #{tpu_custom_call.1} parent=39 // pred_region
              // Predicated region
              $region56: #{tpu_custom_call.1} parent=43 // pred_check
                _
              $region57: #{tpu_custom_call.1} parent=43 // pred_check_branch
                %286 = sbr.rel (0) target = $region59
              $region58: #{tpu_custom_call.1} parent=43 // pred_region
                loop: start=0, step=1, limit=1
                $region60: #{tpu_custom_call.1} parent=58 // loop_pre_header
                  _
                $region61: #{tpu_custom_call.1} parent=58 // loop_header
                  %s288 = sphi 0, %s292
                  %p289 = scmp.ge.s32.totalorder %s288, 1
                  %s293 = sphi %s204, %s204
                  %s294 = sphi %s200, %s200
                $region62: #{tpu_custom_call.1} parent=58 // loop_header_branch
                  %291 = sbr.rel (%p289) target = $region66
                $region63: #{tpu_custom_call.1} parent=58 // loop_body
                  _
                $region64: #{tpu_custom_call.1} parent=58 // loop_footer
                  %s292 = sadd.s32 1, %s288
                $region65: #{tpu_custom_call.1} parent=58 // loop_footer_branch
                  %287 = sbr.rel target = $region61
                $region66: #{tpu_custom_call.1} parent=58 // loop_exit
                  _
                %s296 = ssub.s32 16, 1
                loop: start=0, step=1, limit=1
                $region67: #{tpu_custom_call.1} parent=58 // loop_pre_header
                  _
                $region68: #{tpu_custom_call.1} parent=58 // loop_header
                  %s298 = sphi 0, %s302
                  %p299 = scmp.ge.s32.totalorder %s298, 1
                  %s303 = sphi %s204, %s204
                  %s304 = sphi %s200, %s200
                $region69: #{tpu_custom_call.1} parent=58 // loop_header_branch
                  %301 = sbr.rel (%p299) target = $region73
                $region70: #{tpu_custom_call.1} parent=58 // loop_body
                  %v305 = vld [vmem:[%s303] sm:%s296]
                  %306 = vst [vmem:[%s304] sm:%s296] %v305
                  %v307 = vld [vmem:[%s303 + $0x8] sm:%s296]
                  %308 = vst [vmem:[%s304 + $0x4] sm:%s296] %v307
                  %v309 = vld [vmem:[%s303 + $0x10] sm:%s296]
                  %310 = vst [vmem:[%s304 + $0x8] sm:%s296] %v309
                  %v311 = vld [vmem:[%s303 + $0x18] sm:%s296]
                  %312 = vst [vmem:[%s304 + $0xc] sm:%s296] %v311
                  %v313 = vld [vmem:[%s303 + $0x20] sm:%s296]
                  %314 = vst [vmem:[%s304 + $0x10] sm:%s296] %v313
                  %v315 = vld [vmem:[%s303 + $0x28] sm:%s296]
                  %316 = vst [vmem:[%s304 + $0x14] sm:%s296] %v315
                  %v317 = vld [vmem:[%s303 + $0x30] sm:%s296]
                  %318 = vst [vmem:[%s304 + $0x18] sm:%s296] %v317
                  %v319 = vld [vmem:[%s303 + $0x38] sm:%s296]
                  %320 = vst [vmem:[%s304 + $0x1c] sm:%s296] %v319
                  %v321 = vld [vmem:[%s303 + $0x40] sm:%s296]
                  %322 = vst [vmem:[%s304 + $0x20] sm:%s296] %v321
                  %v323 = vld [vmem:[%s303 + $0x48] sm:%s296]
                  %324 = vst [vmem:[%s304 + $0x24] sm:%s296] %v323
                  %v325 = vld [vmem:[%s303 + $0x50] sm:%s296]
                  %326 = vst [vmem:[%s304 + $0x28] sm:%s296] %v325
                  %v327 = vld [vmem:[%s303 + $0x58] sm:%s296]
                  %328 = vst [vmem:[%s304 + $0x2c] sm:%s296] %v327
                  %v329 = vld [vmem:[%s303 + $0x60] sm:%s296]
                  %330 = vst [vmem:[%s304 + $0x30] sm:%s296] %v329
                  %v331 = vld [vmem:[%s303 + $0x68] sm:%s296]
                  %332 = vst [vmem:[%s304 + $0x34] sm:%s296] %v331
                  %v333 = vld [vmem:[%s303 + $0x70] sm:%s296]
                  %334 = vst [vmem:[%s304 + $0x38] sm:%s296] %v333
                  %v335 = vld [vmem:[%s303 + $0x78] sm:%s296]
                  %336 = vst [vmem:[%s304 + $0x3c] sm:%s296] %v335
                  %v337 = vld [vmem:[%s303 + $0x80] sm:%s296]
                  %338 = vst [vmem:[%s304 + $0x40] sm:%s296] %v337
                  %v339 = vld [vmem:[%s303 + $0x88] sm:%s296]
                  %340 = vst [vmem:[%s304 + $0x44] sm:%s296] %v339
                  %v341 = vld [vmem:[%s303 + $0x90] sm:%s296]
                  %342 = vst [vmem:[%s304 + $0x48] sm:%s296] %v341
                  %v343 = vld [vmem:[%s303 + $0x98] sm:%s296]
                  %344 = vst [vmem:[%s304 + $0x4c] sm:%s296] %v343
                  %v345 = vld [vmem:[%s303 + $0xa0] sm:%s296]
                  %346 = vst [vmem:[%s304 + $0x50] sm:%s296] %v345
                  %v347 = vld [vmem:[%s303 + $0xa8] sm:%s296]
                  %348 = vst [vmem:[%s304 + $0x54] sm:%s296] %v347
                  %v349 = vld [vmem:[%s303 + $0xb0] sm:%s296]
                  %350 = vst [vmem:[%s304 + $0x58] sm:%s296] %v349
                  %v351 = vld [vmem:[%s303 + $0xb8] sm:%s296]
                  %352 = vst [vmem:[%s304 + $0x5c] sm:%s296] %v351
                  %v353 = vld [vmem:[%s303 + $0xc0] sm:%s296]
                  %354 = vst [vmem:[%s304 + $0x60] sm:%s296] %v353
                  %v355 = vld [vmem:[%s303 + $0xc8] sm:%s296]
                  %356 = vst [vmem:[%s304 + $0x64] sm:%s296] %v355
                  %v357 = vld [vmem:[%s303 + $0xd0] sm:%s296]
                  %358 = vst [vmem:[%s304 + $0x68] sm:%s296] %v357
                  %v359 = vld [vmem:[%s303 + $0xd8] sm:%s296]
                  %360 = vst [vmem:[%s304 + $0x6c] sm:%s296] %v359
                  %v361 = vld [vmem:[%s303 + $0xe0] sm:%s296]
                  %362 = vst [vmem:[%s304 + $0x70] sm:%s296] %v361
                  %v363 = vld [vmem:[%s303 + $0xe8] sm:%s296]
                  %364 = vst [vmem:[%s304 + $0x74] sm:%s296] %v363
                  %v365 = vld [vmem:[%s303 + $0xf0] sm:%s296]
                  %366 = vst [vmem:[%s304 + $0x78] sm:%s296] %v365
                  %v367 = vld [vmem:[%s303 + $0xf8] sm:%s296]
                  %368 = vst [vmem:[%s304 + $0x7c] sm:%s296] %v367
                $region71: #{tpu_custom_call.1} parent=58 // loop_footer
                  %s302 = sadd.s32 1, %s298
                $region72: #{tpu_custom_call.1} parent=58 // loop_footer_branch
                  %297 = sbr.rel target = $region68
                $region73: #{tpu_custom_call.1} parent=58 // loop_exit
                  _
              $region59: #{tpu_custom_call.1} parent=43 // pred_fallthru
                _
            $region44: #{tpu_custom_call.1} parent=39 // pred_fallthru
              _
            // Predicated region
            $region45: #{tpu_custom_call.1} parent=39 // pred_check
              _
            $region46: #{tpu_custom_call.1} parent=39 // pred_check_branch
              %210 = sbr.rel (0) target = $region48
            $region47: #{tpu_custom_call.1} parent=39 // pred_region
              %s212 = ssub.s32 16, 1
              loop: start=0, step=1, limit=1
              $region49: #{tpu_custom_call.1} parent=47 // loop_pre_header
                _
              $region50: #{tpu_custom_call.1} parent=47 // loop_header
                %s214 = sphi 0, %s218
                %p215 = scmp.ge.s32.totalorder %s214, 1
                %s219 = sphi %s204, %s204
                %s220 = sphi %s200, %s200
              $region51: #{tpu_custom_call.1} parent=47 // loop_header_branch
                %217 = sbr.rel (%p215) target = $region55
              $region52: #{tpu_custom_call.1} parent=47 // loop_body
                %v221 = vld [vmem:[%s219] sm:%s212]
                %222 = vst [vmem:[%s220] sm:%s212] %v221
                %v223 = vld [vmem:[%s219 + $0x8] sm:%s212]
                %224 = vst [vmem:[%s220 + $0x4] sm:%s212] %v223
                %v225 = vld [vmem:[%s219 + $0x10] sm:%s212]
                %226 = vst [vmem:[%s220 + $0x8] sm:%s212] %v225
                %v227 = vld [vmem:[%s219 + $0x18] sm:%s212]
                %228 = vst [vmem:[%s220 + $0xc] sm:%s212] %v227
                %v229 = vld [vmem:[%s219 + $0x20] sm:%s212]
                %230 = vst [vmem:[%s220 + $0x10] sm:%s212] %v229
                %v231 = vld [vmem:[%s219 + $0x28] sm:%s212]
                %232 = vst [vmem:[%s220 + $0x14] sm:%s212] %v231
                %v233 = vld [vmem:[%s219 + $0x30] sm:%s212]
                %234 = vst [vmem:[%s220 + $0x18] sm:%s212] %v233
                %v235 = vld [vmem:[%s219 + $0x38] sm:%s212]
                %236 = vst [vmem:[%s220 + $0x1c] sm:%s212] %v235
                %v237 = vld [vmem:[%s219 + $0x40] sm:%s212]
                %238 = vst [vmem:[%s220 + $0x20] sm:%s212] %v237
                %v239 = vld [vmem:[%s219 + $0x48] sm:%s212]
                %240 = vst [vmem:[%s220 + $0x24] sm:%s212] %v239
                %v241 = vld [vmem:[%s219 + $0x50] sm:%s212]
                %242 = vst [vmem:[%s220 + $0x28] sm:%s212] %v241
                %v243 = vld [vmem:[%s219 + $0x58] sm:%s212]
                %244 = vst [vmem:[%s220 + $0x2c] sm:%s212] %v243
                %v245 = vld [vmem:[%s219 + $0x60] sm:%s212]
                %246 = vst [vmem:[%s220 + $0x30] sm:%s212] %v245
                %v247 = vld [vmem:[%s219 + $0x68] sm:%s212]
                %248 = vst [vmem:[%s220 + $0x34] sm:%s212] %v247
                %v249 = vld [vmem:[%s219 + $0x70] sm:%s212]
                %250 = vst [vmem:[%s220 + $0x38] sm:%s212] %v249
                %v251 = vld [vmem:[%s219 + $0x78] sm:%s212]
                %252 = vst [vmem:[%s220 + $0x3c] sm:%s212] %v251
                %v253 = vld [vmem:[%s219 + $0x80] sm:%s212]
                %254 = vst [vmem:[%s220 + $0x40] sm:%s212] %v253
                %v255 = vld [vmem:[%s219 + $0x88] sm:%s212]
                %256 = vst [vmem:[%s220 + $0x44] sm:%s212] %v255
                %v257 = vld [vmem:[%s219 + $0x90] sm:%s212]
                %258 = vst [vmem:[%s220 + $0x48] sm:%s212] %v257
                %v259 = vld [vmem:[%s219 + $0x98] sm:%s212]
                %260 = vst [vmem:[%s220 + $0x4c] sm:%s212] %v259
                %v261 = vld [vmem:[%s219 + $0xa0] sm:%s212]
                %262 = vst [vmem:[%s220 + $0x50] sm:%s212] %v261
                %v263 = vld [vmem:[%s219 + $0xa8] sm:%s212]
                %264 = vst [vmem:[%s220 + $0x54] sm:%s212] %v263
                %v265 = vld [vmem:[%s219 + $0xb0] sm:%s212]
                %266 = vst [vmem:[%s220 + $0x58] sm:%s212] %v265
                %v267 = vld [vmem:[%s219 + $0xb8] sm:%s212]
                %268 = vst [vmem:[%s220 + $0x5c] sm:%s212] %v267
                %v269 = vld [vmem:[%s219 + $0xc0] sm:%s212]
                %270 = vst [vmem:[%s220 + $0x60] sm:%s212] %v269
                %v271 = vld [vmem:[%s219 + $0xc8] sm:%s212]
                %272 = vst [vmem:[%s220 + $0x64] sm:%s212] %v271
                %v273 = vld [vmem:[%s219 + $0xd0] sm:%s212]
                %274 = vst [vmem:[%s220 + $0x68] sm:%s212] %v273
                %v275 = vld [vmem:[%s219 + $0xd8] sm:%s212]
                %276 = vst [vmem:[%s220 + $0x6c] sm:%s212] %v275
                %v277 = vld [vmem:[%s219 + $0xe0] sm:%s212]
                %278 = vst [vmem:[%s220 + $0x70] sm:%s212] %v277
                %v279 = vld [vmem:[%s219 + $0xe8] sm:%s212]
                %280 = vst [vmem:[%s220 + $0x74] sm:%s212] %v279
                %v281 = vld [vmem:[%s219 + $0xf0] sm:%s212]
                %282 = vst [vmem:[%s220 + $0x78] sm:%s212] %v281
                %v283 = vld [vmem:[%s219 + $0xf8] sm:%s212]
                %284 = vst [vmem:[%s220 + $0x7c] sm:%s212] %v283
              $region53: #{tpu_custom_call.1} parent=47 // loop_footer
                %s218 = sadd.s32 1, %s214
              $region54: #{tpu_custom_call.1} parent=47 // loop_footer_branch
                %213 = sbr.rel target = $region50
              $region55: #{tpu_custom_call.1} parent=47 // loop_exit
                _
            $region48: #{tpu_custom_call.1} parent=39 // pred_fallthru
              _
          $region40: #{tpu_custom_call.1} parent=35 // pred_fallthru
            _
          %369 = vnop
        $region36: #{tpu_custom_call.1} parent=31 // pred_fallthru
          _
      $region32: #{tpu_custom_call.1} parent=5 // pred_fallthru
        _
      %p370 = scmp.le.s32.totalorder 1, %s11
      %p371 = scmp.lt.s32.totalorder %s11, 5
      %p372 = pnand %p370, %p371
      %p373 = pneg %p372
      // Predicated region
      $region74: #{tpu_custom_call.1} parent=5 // pred_check
        _
      $region75: #{tpu_custom_call.1} parent=5 // pred_check_branch
        %375 = sbr.rel (%p372) target = $region77
      $region76: #{tpu_custom_call.1} parent=5 // pred_region
        %s376 = ssub.s32 %s11, 1
        %s377 = sand.u32 %s38, 1
        %s378 = sand.u32 %s38, 1
        %s379 = smul.addr %s378, 128
        %s380 = scalar_lea.vmem [#allocation4], %s379
        // Predicated region
        $region78: #{tpu_custom_call.1} parent=76 // pred_check
          %p381 = pneg %p51
        $region79: #{tpu_custom_call.1} parent=76 // pred_check_branch
          %383 = sbr.rel (%p381) target = $region81
        $region80: #{tpu_custom_call.1} parent=76 // pred_region
          _
        $region81: #{tpu_custom_call.1} parent=76 // pred_fallthru
          _
        %s384 = sand.u32 %s38, 1
        %s385 = sand.u32 %s38, 1
        %s386 = smul.addr %s385, 128
        %s387 = scalar_lea.vmem [#allocation4], %s386
        %p388 = pneg %p51
        %p389 = pneg %p48
        %p390 = pneg %p72
        %p391 = pneg %p69
        %p392 = pneg %p93
        %p393 = pneg %p90
        %p394 = pneg %p114
        %p395 = pneg %p111
        %p396 = pneg %p135
        %p397 = pneg %p132
        %p398 = pneg %p163
        %p399 = pneg %p160
        %s400 = sand.u32 %s150, 1
        %s401 = sand.u32 %s150, 1
        %s402 = smul.addr %s401, 128
        %s403 = scalar_lea.vmem [#allocation5], %s402
        %v405 = vld [vmem:[%s380] sm:$0xf]
        %v406 = vld [vmem:[%s380 + $0x4] sm:$0xf]
        %v407 = vld [vmem:[%s380 + $0x8] sm:$0xf]
        %v408 = vld [vmem:[%s380 + $0xc] sm:$0xf]
        %v409 = vld [vmem:[%s380 + $0x10] sm:$0xf]
        %v410 = vld [vmem:[%s380 + $0x14] sm:$0xf]
        %v411 = vld [vmem:[%s380 + $0x18] sm:$0xf]
        %v412 = vld [vmem:[%s380 + $0x1c] sm:$0xf]
        %v413 = vld [vmem:[%s380 + $0x20] sm:$0xf]
        %v414 = vld [vmem:[%s380 + $0x24] sm:$0xf]
        %v415 = vld [vmem:[%s380 + $0x28] sm:$0xf]
        %v416 = vld [vmem:[%s380 + $0x2c] sm:$0xf]
        %v417 = vld [vmem:[%s380 + $0x30] sm:$0xf]
        %v418 = vld [vmem:[%s380 + $0x34] sm:$0xf]
        %v419 = vld [vmem:[%s380 + $0x38] sm:$0xf]
        %v420 = vld [vmem:[%s380 + $0x3c] sm:$0xf]
        %v421 = vld [vmem:[%s380 + $0x40] sm:$0xf]
        %v422 = vld [vmem:[%s380 + $0x44] sm:$0xf]
        %v423 = vld [vmem:[%s380 + $0x48] sm:$0xf]
        %v424 = vld [vmem:[%s380 + $0x4c] sm:$0xf]
        %v425 = vld [vmem:[%s380 + $0x50] sm:$0xf]
        %v426 = vld [vmem:[%s380 + $0x54] sm:$0xf]
        %v427 = vld [vmem:[%s380 + $0x58] sm:$0xf]
        %v428 = vld [vmem:[%s380 + $0x5c] sm:$0xf]
        %v429 = vld [vmem:[%s380 + $0x60] sm:$0xf]
        %v430 = vld [vmem:[%s380 + $0x64] sm:$0xf]
        %v431 = vld [vmem:[%s380 + $0x68] sm:$0xf]
        %v432 = vld [vmem:[%s380 + $0x6c] sm:$0xf]
        %v433 = vld [vmem:[%s380 + $0x70] sm:$0xf]
        %v434 = vld [vmem:[%s380 + $0x74] sm:$0xf]
        %v435 = vld [vmem:[%s380 + $0x78] sm:$0xf]
        %v436 = vld [vmem:[%s380 + $0x7c] sm:$0xf]
        %v437 = vrot.slane %v407, 4
        %vm438 = vcmask 1047556
        %v439 = vsel %vm438, %v437, %v405
        %v441 = vunpack.c.l.s4 1983009808
        %v442 = vunpack.c.0.s8 %v441
        %v443 = vperm.slane %v439, %v442
        %v444 = vrot.slane %v408, 4
        %v445 = vsel %vm438, %v444, %v406
        %v447 = vunpack.c.l.s4 1983009808
        %v448 = vunpack.c.0.s8 %v447
        %v449 = vperm.slane %v445, %v448
        %v450 = vrot.slane %v411, 4
        %v451 = vsel %vm438, %v450, %v409
        %v453 = vunpack.c.l.s4 1983009808
        %v454 = vunpack.c.0.s8 %v453
        %v455 = vperm.slane %v451, %v454
        %v456 = vrot.slane %v412, 4
        %v457 = vsel %vm438, %v456, %v410
        %v459 = vunpack.c.l.s4 1983009808
        %v460 = vunpack.c.0.s8 %v459
        %v461 = vperm.slane %v457, %v460
        %v462 = vrot.slane %v449, 4
        %v463 = vsel %vm438, %v462, %v443
        %v464 = vrot.slane %v443, 4
        %v465 = vsel %vm438, %v449, %v464
        %v467 = vunpack.c.l.s4 1934713408
        %v468 = vunpack.c.0.s8 %v467
        %v469 = vperm.slane %v463, %v468
        %v471 = vunpack.c.l.s4 1934713408
        %v472 = vunpack.c.0.s8 %v471
        %v473 = vperm.slane %v465, %v472
        %v474 = vrot.slane %v461, 4
        %v475 = vsel %vm438, %v474, %v455
        %v476 = vrot.slane %v455, 4
        %v477 = vsel %vm438, %v461, %v476
        %v479 = vunpack.c.l.s4 1934713408
        %v480 = vunpack.c.0.s8 %v479
        %v481 = vperm.slane %v475, %v480
        %v483 = vunpack.c.l.s4 1934713408
        %v484 = vunpack.c.0.s8 %v483
        %v485 = vperm.slane %v477, %v484
        %v486 = vrot.slane %v481, 4
        %v487 = vsel %vm438, %v486, %v469
        %v488 = vrot.slane %v469, 4
        %v489 = vsel %vm438, %v481, %v488
        %v490 = vrot.slane %v485, 4
        %v491 = vsel %vm438, %v490, %v473
        %v492 = vrot.slane %v473, 4
        %v493 = vsel %vm438, %v485, %v492
        %v494 = vrot.slane %v415, 4
        %v495 = vsel %vm438, %v494, %v413
        %v497 = vunpack.c.l.s4 1983009808
        %v498 = vunpack.c.0.s8 %v497
        %v499 = vperm.slane %v495, %v498
        %v500 = vrot.slane %v416, 4
        %v501 = vsel %vm438, %v500, %v414
        %v503 = vunpack.c.l.s4 1983009808
        %v504 = vunpack.c.0.s8 %v503
        %v505 = vperm.slane %v501, %v504
        %v506 = vrot.slane %v419, 4
        %v507 = vsel %vm438, %v506, %v417
        %v509 = vunpack.c.l.s4 1983009808
        %v510 = vunpack.c.0.s8 %v509
        %v511 = vperm.slane %v507, %v510
        %v512 = vrot.slane %v420, 4
        %v513 = vsel %vm438, %v512, %v418
        %v515 = vunpack.c.l.s4 1983009808
        %v516 = vunpack.c.0.s8 %v515
        %v517 = vperm.slane %v513, %v516
        %v518 = vrot.slane %v505, 4
        %v519 = vsel %vm438, %v518, %v499
        %v520 = vrot.slane %v499, 4
        %v521 = vsel %vm438, %v505, %v520
        %v523 = vunpack.c.l.s4 1934713408
        %v524 = vunpack.c.0.s8 %v523
        %v525 = vperm.slane %v519, %v524
        %v527 = vunpack.c.l.s4 1934713408
        %v528 = vunpack.c.0.s8 %v527
        %v529 = vperm.slane %v521, %v528
        %v530 = vrot.slane %v517, 4
        %v531 = vsel %vm438, %v530, %v511
        %v532 = vrot.slane %v511, 4
        %v533 = vsel %vm438, %v517, %v532
        %v535 = vunpack.c.l.s4 1934713408
        %v536 = vunpack.c.0.s8 %v535
        %v537 = vperm.slane %v531, %v536
        %v539 = vunpack.c.l.s4 1934713408
        %v540 = vunpack.c.0.s8 %v539
        %v541 = vperm.slane %v533, %v540
        %v542 = vrot.slane %v537, 4
        %v543 = vsel %vm438, %v542, %v525
        %v544 = vrot.slane %v525, 4
        %v545 = vsel %vm438, %v537, %v544
        %v546 = vrot.slane %v541, 4
        %v547 = vsel %vm438, %v546, %v529
        %v548 = vrot.slane %v529, 4
        %v549 = vsel %vm438, %v541, %v548
        %v550 = vrot.slane %v423, 4
        %v551 = vsel %vm438, %v550, %v421
        %v553 = vunpack.c.l.s4 1983009808
        %v554 = vunpack.c.0.s8 %v553
        %v555 = vperm.slane %v551, %v554
        %v556 = vrot.slane %v424, 4
        %v557 = vsel %vm438, %v556, %v422
        %v559 = vunpack.c.l.s4 1983009808
        %v560 = vunpack.c.0.s8 %v559
        %v561 = vperm.slane %v557, %v560
        %v562 = vrot.slane %v427, 4
        %v563 = vsel %vm438, %v562, %v425
        %v565 = vunpack.c.l.s4 1983009808
        %v566 = vunpack.c.0.s8 %v565
        %v567 = vperm.slane %v563, %v566
        %v568 = vrot.slane %v428, 4
        %v569 = vsel %vm438, %v568, %v426
        %v571 = vunpack.c.l.s4 1983009808
        %v572 = vunpack.c.0.s8 %v571
        %v573 = vperm.slane %v569, %v572
        %v574 = vrot.slane %v561, 4
        %v575 = vsel %vm438, %v574, %v555
        %v576 = vrot.slane %v555, 4
        %v577 = vsel %vm438, %v561, %v576
        %v579 = vunpack.c.l.s4 1934713408
        %v580 = vunpack.c.0.s8 %v579
        %v581 = vperm.slane %v575, %v580
        %v583 = vunpack.c.l.s4 1934713408
        %v584 = vunpack.c.0.s8 %v583
        %v585 = vperm.slane %v577, %v584
        %v586 = vrot.slane %v573, 4
        %v587 = vsel %vm438, %v586, %v567
        %v588 = vrot.slane %v567, 4
        %v589 = vsel %vm438, %v573, %v588
        %v591 = vunpack.c.l.s4 1934713408
        %v592 = vunpack.c.0.s8 %v591
        %v593 = vperm.slane %v587, %v592
        %v595 = vunpack.c.l.s4 1934713408
        %v596 = vunpack.c.0.s8 %v595
        %v597 = vperm.slane %v589, %v596
        %v598 = vrot.slane %v593, 4
        %v599 = vsel %vm438, %v598, %v581
        %v600 = vrot.slane %v581, 4
        %v601 = vsel %vm438, %v593, %v600
        %v602 = vrot.slane %v597, 4
        %v603 = vsel %vm438, %v602, %v585
        %v604 = vrot.slane %v585, 4
        %v605 = vsel %vm438, %v597, %v604
        %v606 = vrot.slane %v431, 4
        %v607 = vsel %vm438, %v606, %v429
        %v609 = vunpack.c.l.s4 1983009808
        %v610 = vunpack.c.0.s8 %v609
        %v611 = vperm.slane %v607, %v610
        %v612 = vrot.slane %v432, 4
        %v613 = vsel %vm438, %v612, %v430
        %v615 = vunpack.c.l.s4 1983009808
        %v616 = vunpack.c.0.s8 %v615
        %v617 = vperm.slane %v613, %v616
        %v618 = vrot.slane %v435, 4
        %v619 = vsel %vm438, %v618, %v433
        %v621 = vunpack.c.l.s4 1983009808
        %v622 = vunpack.c.0.s8 %v621
        %v623 = vperm.slane %v619, %v622
        %v624 = vrot.slane %v436, 4
        %v625 = vsel %vm438, %v624, %v434
        %v627 = vunpack.c.l.s4 1983009808
        %v628 = vunpack.c.0.s8 %v627
        %v629 = vperm.slane %v625, %v628
        %v630 = vrot.slane %v617, 4
        %v631 = vsel %vm438, %v630, %v611
        %v632 = vrot.slane %v611, 4
        %v633 = vsel %vm438, %v617, %v632
        %v635 = vunpack.c.l.s4 1934713408
        %v636 = vunpack.c.0.s8 %v635
        %v637 = vperm.slane %v631, %v636
        %v639 = vunpack.c.l.s4 1934713408
        %v640 = vunpack.c.0.s8 %v639
        %v641 = vperm.slane %v633, %v640
        %v642 = vrot.slane %v629, 4
        %v643 = vsel %vm438, %v642, %v623
        %v644 = vrot.slane %v623, 4
        %v645 = vsel %vm438, %v629, %v644
        %v647 = vunpack.c.l.s4 1934713408
        %v648 = vunpack.c.0.s8 %v647
        %v649 = vperm.slane %v643, %v648
        %v651 = vunpack.c.l.s4 1934713408
        %v652 = vunpack.c.0.s8 %v651
        %v653 = vperm.slane %v645, %v652
        %v654 = vrot.slane %v649, 4
        %v655 = vsel %vm438, %v654, %v637
        %v656 = vrot.slane %v637, 4
        %v657 = vsel %vm438, %v649, %v656
        %v658 = vrot.slane %v653, 4
        %v659 = vsel %vm438, %v658, %v641
        %v660 = vrot.slane %v641, 4
        %v661 = vsel %vm438, %v653, %v660
        %666 = vrot.lane.b32.xlu0 %v489, 4
        %v667 = vpop.permute.xlu0 %666
        %668 = vrot.lane.b32.xlu0 %v545, 4
        %v669 = vpop.permute.xlu0 %668
        %670 = vrot.lane.b32.xlu0 %v601, 4
        %v671 = vpop.permute.xlu0 %670
        %672 = vrot.lane.b32.xlu0 %v657, 4
        %v673 = vpop.permute.xlu0 %672
        %682 = vrot.lane.b32.xlu0 %v491, 8
        %v683 = vpop.permute.xlu0 %682
        %684 = vrot.lane.b32.xlu0 %v547, 8
        %v685 = vpop.permute.xlu0 %684
        %686 = vrot.lane.b32.xlu0 %v603, 8
        %v687 = vpop.permute.xlu0 %686
        %688 = vrot.lane.b32.xlu0 %v659, 8
        %v689 = vpop.permute.xlu0 %688
        %698 = vrot.lane.b32.xlu0 %v493, 12
        %v699 = vpop.permute.xlu0 %698
        %700 = vrot.lane.b32.xlu0 %v549, 12
        %v701 = vpop.permute.xlu0 %700
        %702 = vrot.lane.b32.xlu0 %v605, 12
        %v703 = vpop.permute.xlu0 %702
        %704 = vrot.lane.b32.xlu0 %v661, 12
        %v705 = vpop.permute.xlu0 %704
        %vm710 = vcmask 31744
        %v711 = vsel %vm710, %v487, %v667
        %v712 = vsel %vm710, %v543, %v669
        %v713 = vsel %vm710, %v599, %v671
        %v714 = vsel %vm710, %v655, %v673
        %vm715 = vcmask 64512
        %v716 = vsel %vm715, %v711, %v683
        %v717 = vsel %vm715, %v712, %v685
        %v718 = vsel %vm715, %v713, %v687
        %v719 = vsel %vm715, %v714, %v689
        %vm720 = vcmask 97280
        %v721 = vsel %vm720, %v716, %v699
        %v722 = vsel %vm720, %v717, %v701
        %v723 = vsel %vm720, %v718, %v703
        %v724 = vsel %vm720, %v719, %v705
        %v725 = vpack.c.bf16 %v722, %v721
        %v726 = vpack.c.bf16 %v724, %v723
        %v727 = vld [vmem:[%s1] sm:$0xf]
        %v728 = vld [vmem:[%s1 + $0x4] sm:$0xf]
        %v729 = vld [vmem:[%s1 + $0x8] sm:$0xf]
        %v730 = vld [vmem:[%s1 + $0xc] sm:$0xf]
        %v731 = vld [vmem:[%s1 + $0x10] sm:$0xf]
        %v732 = vld [vmem:[%s1 + $0x14] sm:$0xf]
        %v733 = vld [vmem:[%s1 + $0x18] sm:$0xf]
        %v734 = vld [vmem:[%s1 + $0x1c] sm:$0xf]
        %v735 = vld [vmem:[%s1 + $0x20] sm:$0xf]
        %v736 = vld [vmem:[%s1 + $0x24] sm:$0xf]
        %v737 = vld [vmem:[%s1 + $0x28] sm:$0xf]
        %v738 = vld [vmem:[%s1 + $0x2c] sm:$0xf]
        %v739 = vld [vmem:[%s2] sm:$0xff]
        %v740 = vld [vmem:[%s2 + $0x8] sm:$0xff]
        %v741 = vld [vmem:[%s2 + $0x10] sm:$0xff]
        %v742 = vld [vmem:[%s2 + $0x18] sm:$0xff]
        %v743 = vld [vmem:[%s2 + $0x20] sm:$0xff]
        %v744 = vld [vmem:[%s2 + $0x28] sm:$0xff]
        %v745 = vld [vmem:[%s2 + $0x30] sm:$0xff]
        %v746 = vld [vmem:[%s2 + $0x38] sm:$0xff]
        %v747 = vld [vmem:[%s2 + $0x40] sm:$0xff]
        %v748 = vld [vmem:[%s2 + $0x48] sm:$0xff]
        %v749 = vld [vmem:[%s2 + $0x50] sm:$0xff]
        %v750 = vld [vmem:[%s2 + $0x58] sm:$0xff]
        %752 = vset.pattern.permute.xlu0 0
        %753 = vperm.xlu0 %752, %v739
        %v754 = vpop.permute.xlu0 %753
        %757 = vset.pattern.permute.xlu0 0
        %758 = vperm.xlu0 %757, %v740
        %v759 = vpop.permute.xlu0 %758
        %762 = vset.pattern.permute.xlu0 0
        %763 = vperm.xlu0 %762, %v741
        %v764 = vpop.permute.xlu0 %763
        %767 = vset.pattern.permute.xlu0 0
        %768 = vperm.xlu0 %767, %v742
        %v769 = vpop.permute.xlu0 %768
        %772 = vset.pattern.permute.xlu0 0
        %773 = vperm.xlu0 %772, %v743
        %v774 = vpop.permute.xlu0 %773
        %777 = vset.pattern.permute.xlu0 0
        %778 = vperm.xlu0 %777, %v744
        %v779 = vpop.permute.xlu0 %778
        %782 = vset.pattern.permute.xlu0 0
        %783 = vperm.xlu0 %782, %v745
        %v784 = vpop.permute.xlu0 %783
        %787 = vset.pattern.permute.xlu0 0
        %788 = vperm.xlu0 %787, %v746
        %v789 = vpop.permute.xlu0 %788
        %792 = vset.pattern.permute.xlu0 0
        %793 = vperm.xlu0 %792, %v747
        %v794 = vpop.permute.xlu0 %793
        %797 = vset.pattern.permute.xlu0 0
        %798 = vperm.xlu0 %797, %v748
        %v799 = vpop.permute.xlu0 %798
        %802 = vset.pattern.permute.xlu0 0
        %803 = vperm.xlu0 %802, %v749
        %v804 = vpop.permute.xlu0 %803
        %807 = vset.pattern.permute.xlu0 0
        %808 = vperm.xlu0 %807, %v750
        %v809 = vpop.permute.xlu0 %808
        %v823 = vunpack.c.l.b16 %v727
        %v824 = vunpack.c.l.b16 %v728
        %v825 = vunpack.c.l.b16 %v729
        %v826 = vunpack.c.l.b16 %v730
        %v827 = vunpack.c.l.b16 %v731
        %v828 = vunpack.c.l.b16 %v732
        %v829 = vunpack.c.l.b16 %v733
        %v830 = vunpack.c.l.b16 %v734
        %v831 = vunpack.c.l.b16 %v735
        %v832 = vunpack.c.l.b16 %v736
        %v833 = vunpack.c.l.b16 %v737
        %v834 = vunpack.c.l.b16 %v738
        %v835 = vpack.c.b16 %v824, %v823
        %v836 = vpack.c.b16 %v826, %v825
        %v837 = vpack.c.b16 %v828, %v827
        %v838 = vpack.c.b16 %v830, %v829
        %v839 = vpack.c.b16 %v832, %v831
        %v840 = vpack.c.b16 %v834, %v833
        %vm841 = vcmask 261120
        %v843 = vsel %vm841, %v835, 0
        %v846 = vsel %vm841, %v836, 0
        %v849 = vsel %vm841, %v837, 0
        %v852 = vsel %vm841, %v838, 0
        %v855 = vsel %vm841, %v839, 0
        %v858 = vsel %vm841, %v840, 0
        %860 = vmatpush.bf16.msra.mxu0 0
        %861 = vmatpush.bf16.msra.mxu0 0
        %862 = vmatpush.bf16.msra.mxu0 0
        %863 = vmatpush.bf16.msra.mxu0 0
        %864 = vmatpush.bf16.msra.mxu0 0
        %865 = vmatpush.bf16.msra.mxu0 0
        %866 = vmatpush.bf16.msra.mxu0 %v726
        %867 = vmatpush.bf16.msra.mxu0 %v725
        %868 = vmatmul.bf16.gmra.mxu0 %v843
        %v869 = vpop.f32.mrf.mxu0
        %v870 = vadd.f32 %v754, %v869
        %v871 = vpop.f32.mrf.mxu0
        %v872 = vadd.f32 %v759, %v871
        %873 = vmatmul.bf16.gmra.mxu0 %v846
        %v874 = vpop.f32.mrf.mxu0
        %v875 = vadd.f32 %v764, %v874
        %v876 = vpop.f32.mrf.mxu0
        %v877 = vadd.f32 %v769, %v876
        %878 = vmatmul.bf16.gmra.mxu0 %v849
        %v879 = vpop.f32.mrf.mxu0
        %v880 = vadd.f32 %v774, %v879
        %v881 = vpop.f32.mrf.mxu0
        %v882 = vadd.f32 %v779, %v881
        %883 = vmatmul.bf16.gmra.mxu0 %v852
        %v884 = vpop.f32.mrf.mxu0
        %v885 = vadd.f32 %v784, %v884
        %v886 = vpop.f32.mrf.mxu0
        %v887 = vadd.f32 %v789, %v886
        %888 = vmatmul.bf16.gmra.mxu0 %v855
        %v889 = vpop.f32.mrf.mxu0
        %v890 = vadd.f32 %v794, %v889
        %v891 = vpop.f32.mrf.mxu0
        %v892 = vadd.f32 %v799, %v891
        %893 = vmatmul.bf16.gmra.mxu0 %v858
        %v894 = vpop.f32.mrf.mxu0
        %v895 = vadd.f32 %v804, %v894
        %v896 = vpop.f32.mrf.mxu0
        %v897 = vadd.f32 %v809, %v896
        %898 = vdwg.mxu0
        %v899 = vmul.f32 %v870, 0.35355338
        %v900 = vmul.f32 %v872, 0.35355338
        %v901 = vmul.f32 %v875, 0.35355338
        %v902 = vmul.f32 %v877, 0.35355338
        %903 = vxpose.xlu0.b32.start [1/16] %v899, 128
        %904 = vxpose.xlu0.b32.cont [2/16] 0.0, 128
        %905 = vxpose.xlu0.b32.cont [3/16] 0.0, 128
        %906 = vxpose.xlu0.b32.cont [4/16] 0.0, 128
        %907 = vxpose.xlu0.b32.cont [5/16] 0.0, 128
        %908 = vxpose.xlu0.b32.cont [6/16] 0.0, 128
        %909 = vxpose.xlu0.b32.cont [7/16] 0.0, 128
        %910 = vxpose.xlu0.b32.cont [8/16] 0.0, 128
        %911 = vxpose.xlu0.b32.cont [9/16] 0.0, 128
        %912 = vxpose.xlu0.b32.cont [10/16] 0.0, 128
        %913 = vxpose.xlu0.b32.cont [11/16] 0.0, 128
        %914 = vxpose.xlu0.b32.cont [12/16] 0.0, 128
        %915 = vxpose.xlu0.b32.cont [13/16] 0.0, 128
        %916 = vxpose.xlu0.b32.cont [14/16] 0.0, 128
        %917 = vxpose.xlu0.b32.cont [15/16] 0.0, 128
        %918 = vxpose.xlu0.b32.end [16/16] 0.0, 128
        %v919 = vpop.trf.xlu0
        %v920 = vpop.trf.xlu0
        %v921 = vpop.trf.xlu0
        %v922 = vpop.trf.xlu0
        %v923 = vpop.trf.xlu0
        %v924 = vpop.trf.xlu0
        %v925 = vpop.trf.xlu0
        %v926 = vpop.trf.xlu0
        %v927 = vpop.trf.xlu0
        %v928 = vpop.trf.xlu0
        %v929 = vpop.trf.xlu0
        %v930 = vpop.trf.xlu0
        %v931 = vpop.trf.xlu0
        %v932 = vpop.trf.xlu0
        %v933 = vpop.trf.xlu0
        %v934 = vpop.trf.xlu0
        %935 = vxpose.xlu0.b32.start [1/16] %v900, 128
        %936 = vxpose.xlu0.b32.cont [2/16] 0.0, 128
        %937 = vxpose.xlu0.b32.cont [3/16] 0.0, 128
        %938 = vxpose.xlu0.b32.cont [4/16] 0.0, 128
        %939 = vxpose.xlu0.b32.cont [5/16] 0.0, 128
        %940 = vxpose.xlu0.b32.cont [6/16] 0.0, 128
        %941 = vxpose.xlu0.b32.cont [7/16] 0.0, 128
        %942 = vxpose.xlu0.b32.cont [8/16] 0.0, 128
        %943 = vxpose.xlu0.b32.cont [9/16] 0.0, 128
        %944 = vxpose.xlu0.b32.cont [10/16] 0.0, 128
        %945 = vxpose.xlu0.b32.cont [11/16] 0.0, 128
        %946 = vxpose.xlu0.b32.cont [12/16] 0.0, 128
        %947 = vxpose.xlu0.b32.cont [13/16] 0.0, 128
        %948 = vxpose.xlu0.b32.cont [14/16] 0.0, 128
        %949 = vxpose.xlu0.b32.cont [15/16] 0.0, 128
        %950 = vxpose.xlu0.b32.end [16/16] 0.0, 128
        %v951 = vpop.trf.xlu0
        %v952 = vpop.trf.xlu0
        %v953 = vpop.trf.xlu0
        %v954 = vpop.trf.xlu0
        %v955 = vpop.trf.xlu0
        %v956 = vpop.trf.xlu0
        %v957 = vpop.trf.xlu0
        %v958 = vpop.trf.xlu0
        %v959 = vpop.trf.xlu0
        %v960 = vpop.trf.xlu0
        %v961 = vpop.trf.xlu0
        %v962 = vpop.trf.xlu0
        %v963 = vpop.trf.xlu0
        %v964 = vpop.trf.xlu0
        %v965 = vpop.trf.xlu0
        %v966 = vpop.trf.xlu0
        %967 = vxpose.xlu0.b32.start [1/16] %v901, 128
        %968 = vxpose.xlu0.b32.cont [2/16] 0.0, 128
        %969 = vxpose.xlu0.b32.cont [3/16] 0.0, 128
        %970 = vxpose.xlu0.b32.cont [4/16] 0.0, 128
        %971 = vxpose.xlu0.b32.cont [5/16] 0.0, 128
        %972 = vxpose.xlu0.b32.cont [6/16] 0.0, 128
        %973 = vxpose.xlu0.b32.cont [7/16] 0.0, 128
        %974 = vxpose.xlu0.b32.cont [8/16] 0.0, 128
        %975 = vxpose.xlu0.b32.cont [9/16] 0.0, 128
        %976 = vxpose.xlu0.b32.cont [10/16] 0.0, 128
        %977 = vxpose.xlu0.b32.cont [11/16] 0.0, 128
        %978 = vxpose.xlu0.b32.cont [12/16] 0.0, 128
        %979 = vxpose.xlu0.b32.cont [13/16] 0.0, 128
        %980 = vxpose.xlu0.b32.cont [14/16] 0.0, 128
        %981 = vxpose.xlu0.b32.cont [15/16] 0.0, 128
        %982 = vxpose.xlu0.b32.end [16/16] 0.0, 128
        %v983 = vpop.trf.xlu0
        %v984 = vpop.trf.xlu0
        %v985 = vpop.trf.xlu0
        %v986 = vpop.trf.xlu0
        %v987 = vpop.trf.xlu0
        %v988 = vpop.trf.xlu0
        %v989 = vpop.trf.xlu0
        %v990 = vpop.trf.xlu0
        %v991 = vpop.trf.xlu0
        %v992 = vpop.trf.xlu0
        %v993 = vpop.trf.xlu0
        %v994 = vpop.trf.xlu0
        %v995 = vpop.trf.xlu0
        %v996 = vpop.trf.xlu0
        %v997 = vpop.trf.xlu0
        %v998 = vpop.trf.xlu0
        %999 = vxpose.xlu0.b32.start [1/16] %v902, 128
        %1000 = vxpose.xlu0.b32.cont [2/16] 0.0, 128
        %1001 = vxpose.xlu0.b32.cont [3/16] 0.0, 128
        %1002 = vxpose.xlu0.b32.cont [4/16] 0.0, 128
        %1003 = vxpose.xlu0.b32.cont [5/16] 0.0, 128
        %1004 = vxpose.xlu0.b32.cont [6/16] 0.0, 128
        %1005 = vxpose.xlu0.b32.cont [7/16] 0.0, 128
        %1006 = vxpose.xlu0.b32.cont [8/16] 0.0, 128
        %1007 = vxpose.xlu0.b32.cont [9/16] 0.0, 128
        %1008 = vxpose.xlu0.b32.cont [10/16] 0.0, 128
        %1009 = vxpose.xlu0.b32.cont [11/16] 0.0, 128
        %1010 = vxpose.xlu0.b32.cont [12/16] 0.0, 128
        %1011 = vxpose.xlu0.b32.cont [13/16] 0.0, 128
        %1012 = vxpose.xlu0.b32.cont [14/16] 0.0, 128
        %1013 = vxpose.xlu0.b32.cont [15/16] 0.0, 128
        %1014 = vxpose.xlu0.b32.end [16/16] 0.0, 128
        %v1015 = vpop.trf.xlu0
        %v1016 = vpop.trf.xlu0
        %v1017 = vpop.trf.xlu0
        %v1018 = vpop.trf.xlu0
        %v1019 = vpop.trf.xlu0
        %v1020 = vpop.trf.xlu0
        %v1021 = vpop.trf.xlu0
        %v1022 = vpop.trf.xlu0
        %v1023 = vpop.trf.xlu0
        %v1024 = vpop.trf.xlu0
        %v1025 = vpop.trf.xlu0
        %v1026 = vpop.trf.xlu0
        %v1027 = vpop.trf.xlu0
        %v1028 = vpop.trf.xlu0
        %v1029 = vpop.trf.xlu0
        %v1030 = vpop.trf.xlu0
        %v1031 = vpack.c.bf16 %v919, %v919
        %v1032 = vpack.c.bf16 %v920, %v920
        %v1033 = vpack.c.bf16 %v951, %v951
        %v1034 = vpack.c.bf16 %v952, %v952
        %v1035 = vpack.c.bf16 %v983, %v983
        %v1036 = vpack.c.bf16 %v984, %v984
        %v1037 = vpack.c.bf16 %v1015, %v1015
        %v1038 = vpack.c.bf16 %v1016, %v1016
        %vm1039 = vcmask 60416
        %1040 = vst.msk [vmem:[#allocation2] sm:$0xf] %vm1039, %v1031
        %1041 = vst.msk [vmem:[#allocation2 + $0x4] sm:$0xf] %vm1039, %v1032
        %1042 = vst.msk [vmem:[#allocation2 + $0x8] sm:$0xf] %vm1039, %v1033
        %1043 = vst.msk [vmem:[#allocation2 + $0xc] sm:$0xf] %vm1039, %v1034
        %1044 = vst.msk [vmem:[#allocation2 + $0x10] sm:$0xf] %vm1039, %v1035
        %1045 = vst.msk [vmem:[#allocation2 + $0x14] sm:$0xf] %vm1039, %v1036
        %1046 = vst.msk [vmem:[#allocation2 + $0x18] sm:$0xf] %vm1039, %v1037
        %1047 = vst.msk [vmem:[#allocation2 + $0x1c] sm:$0xf] %vm1039, %v1038
        %v1048 = vpack.c.bf16 %v880, %v880
        %v1049 = vpack.c.bf16 %v882, %v882
        %v1050 = vpack.c.bf16 %v885, %v885
        %v1051 = vpack.c.bf16 %v887, %v887
        %v1052 = vpack.c.bf16 %v890, %v890
        %v1053 = vpack.c.bf16 %v892, %v892
        %v1054 = vpack.c.bf16 %v895, %v895
        %v1055 = vpack.c.bf16 %v897, %v897
        %v1056 = vld [vmem:[#allocation2] sm:$0xf]
        %v1057 = vld [vmem:[#allocation2 + $0x4] sm:$0xf]
        %v1058 = vld [vmem:[#allocation2 + $0x8] sm:$0xf]
        %v1059 = vld [vmem:[#allocation2 + $0xc] sm:$0xf]
        %v1060 = vld [vmem:[#allocation2 + $0x10] sm:$0xf]
        %v1061 = vld [vmem:[#allocation2 + $0x14] sm:$0xf]
        %v1062 = vld [vmem:[#allocation2 + $0x18] sm:$0xf]
        %v1063 = vld [vmem:[#allocation2 + $0x1c] sm:$0xf]
        %v1066 = vunpack.c.l.b16 %v1056
        %v1067 = vunpack.c.l.b16 %v1057
        %v1068 = vpack.c.b16 %v1067, %v1066
        %v1070 = vsel %vm715, %v1068, 0
        %vm1072 = vcmask 1043456
        %v1074 = vsel %vm1072, %v1048, 0
        %1076 = vmatpush.bf16.msra.mxu0 0
        %1077 = vmatpush.bf16.msra.mxu0 0
        %1078 = vmatpush.bf16.msra.mxu0 0
        %1079 = vmatpush.bf16.msra.mxu0 0
        %1080 = vmatpush.bf16.msra.mxu0 0
        %1081 = vmatpush.bf16.msra.mxu0 0
        %1082 = vmatpush.bf16.msra.mxu0 0
        %1083 = vmatpush.bf16.msra.mxu0 %v1074
        %1084 = vmatmul.bf16.gmra.mxu0 %v1070
        %v1085 = vpop.f32.mrf.mxu0
        %v1086 = vadd.f32 0.0, %v1085
        %v1087 = vpop.f32.mrf.mxu0
        %v1088 = vadd.f32 0.0, %v1087
        %1089 = vdwg.mxu0
        %v1092 = vunpack.c.l.b16 %v1058
        %v1093 = vunpack.c.l.b16 %v1059
        %v1094 = vpack.c.b16 %v1093, %v1092
        %v1096 = vsel %vm715, %v1094, 0
        %v1099 = vsel %vm1072, %v1049, 0
        %1101 = vmatpush.bf16.msra.mxu0 0
        %1102 = vmatpush.bf16.msra.mxu0 0
        %1103 = vmatpush.bf16.msra.mxu0 0
        %1104 = vmatpush.bf16.msra.mxu0 0
        %1105 = vmatpush.bf16.msra.mxu0 0
        %1106 = vmatpush.bf16.msra.mxu0 0
        %1107 = vmatpush.bf16.msra.mxu0 0
        %1108 = vmatpush.bf16.msra.mxu0 %v1099
        %1109 = vmatmul.bf16.gmra.mxu0 %v1096
        %v1110 = vpop.f32.mrf.mxu0
        %v1111 = vadd.f32 0.0, %v1110
        %v1112 = vpop.f32.mrf.mxu0
        %v1113 = vadd.f32 0.0, %v1112
        %1114 = vdwg.mxu0
        %v1117 = vunpack.c.l.b16 %v1060
        %v1118 = vunpack.c.l.b16 %v1061
        %v1119 = vpack.c.b16 %v1118, %v1117
        %v1121 = vsel %vm715, %v1119, 0
        %v1124 = vsel %vm1072, %v1050, 0
        %1126 = vmatpush.bf16.msra.mxu0 0
        %1127 = vmatpush.bf16.msra.mxu0 0
        %1128 = vmatpush.bf16.msra.mxu0 0
        %1129 = vmatpush.bf16.msra.mxu0 0
        %1130 = vmatpush.bf16.msra.mxu0 0
        %1131 = vmatpush.bf16.msra.mxu0 0
        %1132 = vmatpush.bf16.msra.mxu0 0
        %1133 = vmatpush.bf16.msra.mxu0 %v1124
        %1134 = vmatmul.bf16.gmra.mxu0 %v1121
        %v1135 = vpop.f32.mrf.mxu0
        %v1136 = vadd.f32 0.0, %v1135
        %v1137 = vpop.f32.mrf.mxu0
        %v1138 = vadd.f32 0.0, %v1137
        %1139 = vdwg.mxu0
        %v1142 = vunpack.c.l.b16 %v1062
        %v1143 = vunpack.c.l.b16 %v1063
        %v1144 = vpack.c.b16 %v1143, %v1142
        %v1146 = vsel %vm715, %v1144, 0
        %v1149 = vsel %vm1072, %v1051, 0
        %1151 = vmatpush.bf16.msra.mxu0 0
        %1152 = vmatpush.bf16.msra.mxu0 0
        %1153 = vmatpush.bf16.msra.mxu0 0
        %1154 = vmatpush.bf16.msra.mxu0 0
        %1155 = vmatpush.bf16.msra.mxu0 0
        %1156 = vmatpush.bf16.msra.mxu0 0
        %1157 = vmatpush.bf16.msra.mxu0 0
        %1158 = vmatpush.bf16.msra.mxu0 %v1149
        %1159 = vmatmul.bf16.gmra.mxu0 %v1146
        %v1160 = vpop.f32.mrf.mxu0
        %v1161 = vadd.f32 0.0, %v1160
        %v1162 = vpop.f32.mrf.mxu0
        %v1163 = vadd.f32 0.0, %v1162
        %1164 = vdwg.mxu0
        %vm1165 = vcmask 130048
        %v1166 = vsel %vm1165, %v1086, -inf
        %1167 = vmax.xlane.f32.xlu0 %v1166
        %v1168 = vpop.xlane.xlu0 %1167
        %v1169 = vsel %vm1165, %v1088, -inf
        %1170 = vmax.xlane.f32.xlu0 %v1169
        %v1171 = vpop.xlane.xlu0 %1170
        %v1172 = vsel %vm1165, %v1111, -inf
        %1173 = vmax.xlane.f32.xlu0 %v1172
        %v1174 = vpop.xlane.xlu0 %1173
        %v1175 = vsel %vm1165, %v1113, -inf
        %1176 = vmax.xlane.f32.xlu0 %v1175
        %v1177 = vpop.xlane.xlu0 %1176
        %v1178 = vsel %vm1165, %v1136, -inf
        %1179 = vmax.xlane.f32.xlu0 %v1178
        %v1180 = vpop.xlane.xlu0 %1179
        %v1181 = vsel %vm1165, %v1138, -inf
        %1182 = vmax.xlane.f32.xlu0 %v1181
        %v1183 = vpop.xlane.xlu0 %1182
        %v1184 = vsel %vm1165, %v1161, -inf
        %1185 = vmax.xlane.f32.xlu0 %v1184
        %v1186 = vpop.xlane.xlu0 %1185
        %v1187 = vsel %vm1165, %v1163, -inf
        %1188 = vmax.xlane.f32.xlu0 %v1187
        %v1189 = vpop.xlane.xlu0 %1188
        %v1190 = vsub.f32 %v1086, %v1168
        %v1191 = vsub.f32 %v1088, %v1171
        %v1192 = vsub.f32 %v1111, %v1174
        %v1193 = vsub.f32 %v1113, %v1177
        %v1194 = vsub.f32 %v1136, %v1180
        %v1195 = vsub.f32 %v1138, %v1183
        %v1196 = vsub.f32 %v1161, %v1186
        %v1197 = vsub.f32 %v1163, %v1189
        %v1198 = vmul.f32 %v1190, 1.442695
        %v1199 = vpow.pop %v1198
        %v1200 = vmul.f32 %v1191, 1.442695
        %v1201 = vpow.pop %v1200
        %v1202 = vmul.f32 %v1192, 1.442695
        %v1203 = vpow.pop %v1202
        %v1204 = vmul.f32 %v1193, 1.442695
        %v1205 = vpow.pop %v1204
        %v1206 = vmul.f32 %v1194, 1.442695
        %v1207 = vpow.pop %v1206
        %v1208 = vmul.f32 %v1195, 1.442695
        %v1209 = vpow.pop %v1208
        %v1210 = vmul.f32 %v1196, 1.442695
        %v1211 = vpow.pop %v1210
        %v1212 = vmul.f32 %v1197, 1.442695
        %v1213 = vpow.pop %v1212
        %v1214 = vsel %vm1165, %v1199, 0.0
        %1215 = vadd.xlane.f32.xlu0 %v1214
        %v1216 = vpop.xlane.xlu0 %1215
        %v1217 = vsel %vm1165, %v1201, 0.0
        %1218 = vadd.xlane.f32.xlu0 %v1217
        %v1219 = vpop.xlane.xlu0 %1218
        %v1220 = vsel %vm1165, %v1203, 0.0
        %1221 = vadd.xlane.f32.xlu0 %v1220
        %v1222 = vpop.xlane.xlu0 %1221
        %v1223 = vsel %vm1165, %v1205, 0.0
        %1224 = vadd.xlane.f32.xlu0 %v1223
        %v1225 = vpop.xlane.xlu0 %1224
        %v1226 = vsel %vm1165, %v1207, 0.0
        %1227 = vadd.xlane.f32.xlu0 %v1226
        %v1228 = vpop.xlane.xlu0 %1227
        %v1229 = vsel %vm1165, %v1209, 0.0
        %1230 = vadd.xlane.f32.xlu0 %v1229
        %v1231 = vpop.xlane.xlu0 %1230
        %v1232 = vsel %vm1165, %v1211, 0.0
        %1233 = vadd.xlane.f32.xlu0 %v1232
        %v1234 = vpop.xlane.xlu0 %1233
        %v1235 = vsel %vm1165, %v1213, 0.0
        %1236 = vadd.xlane.f32.xlu0 %v1235
        %v1237 = vpop.xlane.xlu0 %1236
        %v1238 = vrcp.pop %v1216
        %v1239 = vmul.f32 %v1216, %v1238
        %v1240 = vsub.f32 1.0, %v1239
        %v1241 = vmul.f32 %v1238, %v1240
        %v1242 = vadd.f32 %v1238, %v1241
        %vm1243 = vweird.f32 %v1216
        %vm1244 = vweird.f32 %v1238
        %vm1245 = vmor %vm1243, %vm1244
        %v1246 = vsel %vm1245, %v1238, %v1242
        %v1247 = vand.u32 2147483647, %v1216
        %vm1248 = vcmp.eq.f32.partialorder %v1247, 8.507059e+37
        %v1249 = vand.u32 %v1216, 2147483648
        %v1250 = vor.u32 1.1754944e-38, %v1249
        %v1251 = vsel %vm1248, %v1250, %v1246
        %v1252 = vmul.f32 1.0, %v1251
        %v1253 = vrcp.pop %v1219
        %v1254 = vmul.f32 %v1219, %v1253
        %v1255 = vsub.f32 1.0, %v1254
        %v1256 = vmul.f32 %v1253, %v1255
        %v1257 = vadd.f32 %v1253, %v1256
        %vm1258 = vweird.f32 %v1219
        %vm1259 = vweird.f32 %v1253
        %vm1260 = vmor %vm1258, %vm1259
        %v1261 = vsel %vm1260, %v1253, %v1257
        %v1262 = vand.u32 2147483647, %v1219
        %vm1263 = vcmp.eq.f32.partialorder %v1262, 8.507059e+37
        %v1264 = vand.u32 %v1219, 2147483648
        %v1265 = vor.u32 1.1754944e-38, %v1264
        %v1266 = vsel %vm1263, %v1265, %v1261
        %v1267 = vmul.f32 1.0, %v1266
        %v1268 = vrcp.pop %v1222
        %v1269 = vmul.f32 %v1222, %v1268
        %v1270 = vsub.f32 1.0, %v1269
        %v1271 = vmul.f32 %v1268, %v1270
        %v1272 = vadd.f32 %v1268, %v1271
        %vm1273 = vweird.f32 %v1222
        %vm1274 = vweird.f32 %v1268
        %vm1275 = vmor %vm1273, %vm1274
        %v1276 = vsel %vm1275, %v1268, %v1272
        %v1277 = vand.u32 2147483647, %v1222
        %vm1278 = vcmp.eq.f32.partialorder %v1277, 8.507059e+37
        %v1279 = vand.u32 %v1222, 2147483648
        %v1280 = vor.u32 1.1754944e-38, %v1279
        %v1281 = vsel %vm1278, %v1280, %v1276
        %v1282 = vmul.f32 1.0, %v1281
        %v1283 = vrcp.pop %v1225
        %v1284 = vmul.f32 %v1225, %v1283
        %v1285 = vsub.f32 1.0, %v1284
        %v1286 = vmul.f32 %v1283, %v1285
        %v1287 = vadd.f32 %v1283, %v1286
        %vm1288 = vweird.f32 %v1225
        %vm1289 = vweird.f32 %v1283
        %vm1290 = vmor %vm1288, %vm1289
        %v1291 = vsel %vm1290, %v1283, %v1287
        %v1292 = vand.u32 2147483647, %v1225
        %vm1293 = vcmp.eq.f32.partialorder %v1292, 8.507059e+37
        %v1294 = vand.u32 %v1225, 2147483648
        %v1295 = vor.u32 1.1754944e-38, %v1294
        %v1296 = vsel %vm1293, %v1295, %v1291
        %v1297 = vmul.f32 1.0, %v1296
        %v1298 = vrcp.pop %v1228
        %v1299 = vmul.f32 %v1228, %v1298
        %v1300 = vsub.f32 1.0, %v1299
        %v1301 = vmul.f32 %v1298, %v1300
        %v1302 = vadd.f32 %v1298, %v1301
        %vm1303 = vweird.f32 %v1228
        %vm1304 = vweird.f32 %v1298
        %vm1305 = vmor %vm1303, %vm1304
        %v1306 = vsel %vm1305, %v1298, %v1302
        %v1307 = vand.u32 2147483647, %v1228
        %vm1308 = vcmp.eq.f32.partialorder %v1307, 8.507059e+37
        %v1309 = vand.u32 %v1228, 2147483648
        %v1310 = vor.u32 1.1754944e-38, %v1309
        %v1311 = vsel %vm1308, %v1310, %v1306
        %v1312 = vmul.f32 1.0, %v1311
        %v1313 = vrcp.pop %v1231
        %v1314 = vmul.f32 %v1231, %v1313
        %v1315 = vsub.f32 1.0, %v1314
        %v1316 = vmul.f32 %v1313, %v1315
        %v1317 = vadd.f32 %v1313, %v1316
        %vm1318 = vweird.f32 %v1231
        %vm1319 = vweird.f32 %v1313
        %vm1320 = vmor %vm1318, %vm1319
        %v1321 = vsel %vm1320, %v1313, %v1317
        %v1322 = vand.u32 2147483647, %v1231
        %vm1323 = vcmp.eq.f32.partialorder %v1322, 8.507059e+37
        %v1324 = vand.u32 %v1231, 2147483648
        %v1325 = vor.u32 1.1754944e-38, %v1324
        %v1326 = vsel %vm1323, %v1325, %v1321
        %v1327 = vmul.f32 1.0, %v1326
        %v1328 = vrcp.pop %v1234
        %v1329 = vmul.f32 %v1234, %v1328
        %v1330 = vsub.f32 1.0, %v1329
        %v1331 = vmul.f32 %v1328, %v1330
        %v1332 = vadd.f32 %v1328, %v1331
        %vm1333 = vweird.f32 %v1234
        %vm1334 = vweird.f32 %v1328
        %vm1335 = vmor %vm1333, %vm1334
        %v1336 = vsel %vm1335, %v1328, %v1332
        %v1337 = vand.u32 2147483647, %v1234
        %vm1338 = vcmp.eq.f32.partialorder %v1337, 8.507059e+37
        %v1339 = vand.u32 %v1234, 2147483648
        %v1340 = vor.u32 1.1754944e-38, %v1339
        %v1341 = vsel %vm1338, %v1340, %v1336
        %v1342 = vmul.f32 1.0, %v1341
        %v1343 = vrcp.pop %v1237
        %v1344 = vmul.f32 %v1237, %v1343
        %v1345 = vsub.f32 1.0, %v1344
        %v1346 = vmul.f32 %v1343, %v1345
        %v1347 = vadd.f32 %v1343, %v1346
        %vm1348 = vweird.f32 %v1237
        %vm1349 = vweird.f32 %v1343
        %vm1350 = vmor %vm1348, %vm1349
        %v1351 = vsel %vm1350, %v1343, %v1347
        %v1352 = vand.u32 2147483647, %v1237
        %vm1353 = vcmp.eq.f32.partialorder %v1352, 8.507059e+37
        %v1354 = vand.u32 %v1237, 2147483648
        %v1355 = vor.u32 1.1754944e-38, %v1354
        %v1356 = vsel %vm1353, %v1355, %v1351
        %v1357 = vmul.f32 1.0, %v1356
        %v1358 = vmul.f32 %v1199, %v1252
        %v1359 = vmul.f32 %v1201, %v1267
        %v1360 = vmul.f32 %v1203, %v1282
        %v1361 = vmul.f32 %v1205, %v1297
        %v1362 = vmul.f32 %v1207, %v1312
        %v1363 = vmul.f32 %v1209, %v1327
        %v1364 = vmul.f32 %v1211, %v1342
        %v1365 = vmul.f32 %v1213, %v1357
        %v1366 = vpack.c.bf16 %v1358, %v1358
        %v1367 = vpack.c.bf16 %v1359, %v1359
        %v1368 = vpack.c.bf16 %v1360, %v1360
        %v1369 = vpack.c.bf16 %v1361, %v1361
        %v1370 = vpack.c.bf16 %v1362, %v1362
        %v1371 = vpack.c.bf16 %v1363, %v1363
        %v1372 = vpack.c.bf16 %v1364, %v1364
        %v1373 = vpack.c.bf16 %v1365, %v1365
        %v1376 = vunpack.c.l.b16 %v1366
        %v1377 = vunpack.c.l.b16 %v1367
        %v1378 = vpack.c.b16 %v1377, %v1376
        %v1380 = vsel %vm1165, %v1378, 0
        %v1383 = vsel %vm1165, %v1052, 0
        %1385 = vmatpush.bf16.xpose.msra.mxu0 0
        %1386 = vmatpush.bf16.xpose.msra.mxu0 0
        %1387 = vmatpush.bf16.xpose.msra.mxu0 0
        %1388 = vmatpush.bf16.xpose.msra.mxu0 0
        %1389 = vmatpush.bf16.xpose.msra.mxu0 0
        %1390 = vmatpush.bf16.xpose.msra.mxu0 0
        %1391 = vmatpush.bf16.xpose.msra.mxu0 0
        %1392 = vmatpush.bf16.xpose.msra.mxu0 %v1383
        %1393 = vmatmul.bf16.gmra.mxu0 %v1380
        %v1394 = vpop.f32.mrf.mxu0
        %v1395 = vadd.f32 0.0, %v1394
        %v1396 = vpop.f32.mrf.mxu0
        %v1397 = vadd.f32 0.0, %v1396
        %1398 = vdwg.mxu0
        %v1401 = vunpack.c.l.b16 %v1368
        %v1402 = vunpack.c.l.b16 %v1369
        %v1403 = vpack.c.b16 %v1402, %v1401
        %v1405 = vsel %vm1165, %v1403, 0
        %v1408 = vsel %vm1165, %v1053, 0
        %1410 = vmatpush.bf16.xpose.msra.mxu0 0
        %1411 = vmatpush.bf16.xpose.msra.mxu0 0
        %1412 = vmatpush.bf16.xpose.msra.mxu0 0
        %1413 = vmatpush.bf16.xpose.msra.mxu0 0
        %1414 = vmatpush.bf16.xpose.msra.mxu0 0
        %1415 = vmatpush.bf16.xpose.msra.mxu0 0
        %1416 = vmatpush.bf16.xpose.msra.mxu0 0
        %1417 = vmatpush.bf16.xpose.msra.mxu0 %v1408
        %1418 = vmatmul.bf16.gmra.mxu0 %v1405
        %v1419 = vpop.f32.mrf.mxu0
        %v1420 = vadd.f32 0.0, %v1419
        %v1421 = vpop.f32.mrf.mxu0
        %v1422 = vadd.f32 0.0, %v1421
        %1423 = vdwg.mxu0
        %v1426 = vunpack.c.l.b16 %v1370
        %v1427 = vunpack.c.l.b16 %v1371
        %v1428 = vpack.c.b16 %v1427, %v1426
        %v1430 = vsel %vm1165, %v1428, 0
        %v1433 = vsel %vm1165, %v1054, 0
        %1435 = vmatpush.bf16.xpose.msra.mxu0 0
        %1436 = vmatpush.bf16.xpose.msra.mxu0 0
        %1437 = vmatpush.bf16.xpose.msra.mxu0 0
        %1438 = vmatpush.bf16.xpose.msra.mxu0 0
        %1439 = vmatpush.bf16.xpose.msra.mxu0 0
        %1440 = vmatpush.bf16.xpose.msra.mxu0 0
        %1441 = vmatpush.bf16.xpose.msra.mxu0 0
        %1442 = vmatpush.bf16.xpose.msra.mxu0 %v1433
        %1443 = vmatmul.bf16.gmra.mxu0 %v1430
        %v1444 = vpop.f32.mrf.mxu0
        %v1445 = vadd.f32 0.0, %v1444
        %v1446 = vpop.f32.mrf.mxu0
        %v1447 = vadd.f32 0.0, %v1446
        %1448 = vdwg.mxu0
        %v1451 = vunpack.c.l.b16 %v1372
        %v1452 = vunpack.c.l.b16 %v1373
        %v1453 = vpack.c.b16 %v1452, %v1451
        %v1455 = vsel %vm1165, %v1453, 0
        %v1458 = vsel %vm1165, %v1055, 0
        %1460 = vmatpush.bf16.xpose.msra.mxu0 0
        %1461 = vmatpush.bf16.xpose.msra.mxu0 0
        %1462 = vmatpush.bf16.xpose.msra.mxu0 0
        %1463 = vmatpush.bf16.xpose.msra.mxu0 0
        %1464 = vmatpush.bf16.xpose.msra.mxu0 0
        %1465 = vmatpush.bf16.xpose.msra.mxu0 0
        %1466 = vmatpush.bf16.xpose.msra.mxu0 0
        %1467 = vmatpush.bf16.xpose.msra.mxu0 %v1458
        %1468 = vmatmul.bf16.gmra.mxu0 %v1455
        %v1469 = vpop.f32.mrf.mxu0
        %v1470 = vadd.f32 0.0, %v1469
        %v1471 = vpop.f32.mrf.mxu0
        %v1472 = vadd.f32 0.0, %v1471
        %1473 = vdwg.mxu0
        %1474 = vst.msk [vmem:[#allocation3] sm:$0xff] %vm715, %v1395
        %1475 = vst.msk [vmem:[#allocation3 + $0x8] sm:$0xff] %vm715, %v1397
        %1476 = vst.msk [vmem:[#allocation3 + $0x10] sm:$0xff] %vm715, %v1420
        %1477 = vst.msk [vmem:[#allocation3 + $0x18] sm:$0xff] %vm715, %v1422
        %1478 = vst.msk [vmem:[#allocation3 + $0x20] sm:$0xff] %vm715, %v1445
        %1479 = vst.msk [vmem:[#allocation3 + $0x28] sm:$0xff] %vm715, %v1447
        %1480 = vst.msk [vmem:[#allocation3 + $0x30] sm:$0xff] %vm715, %v1470
        %1481 = vst.msk [vmem:[#allocation3 + $0x38] sm:$0xff] %vm715, %v1472
        %v1482 = vld [vmem:[#allocation3] sm:$0xff]
        %v1483 = vld [vmem:[#allocation3 + $0x8] sm:$0xff]
        %v1484 = vld [vmem:[#allocation3 + $0x10] sm:$0xff]
        %v1485 = vld [vmem:[#allocation3 + $0x18] sm:$0xff]
        %v1486 = vld [vmem:[#allocation3 + $0x20] sm:$0xff]
        %v1487 = vld [vmem:[#allocation3 + $0x28] sm:$0xff]
        %v1488 = vld [vmem:[#allocation3 + $0x30] sm:$0xff]
        %v1489 = vld [vmem:[#allocation3 + $0x38] sm:$0xff]
        %1490 = vxpose.xlu0.b32.start [1/16] %v1482, 128
        %1491 = vxpose.xlu0.b32.cont [2/16] %v1483, 128
        %1492 = vxpose.xlu0.b32.cont [3/16] 0.0, 128
        %1493 = vxpose.xlu0.b32.cont [4/16] 0.0, 128
        %1494 = vxpose.xlu0.b32.cont [5/16] 0.0, 128
        %1495 = vxpose.xlu0.b32.cont [6/16] 0.0, 128
        %1496 = vxpose.xlu0.b32.cont [7/16] 0.0, 128
        %1497 = vxpose.xlu0.b32.cont [8/16] 0.0, 128
        %1498 = vxpose.xlu0.b32.cont [9/16] 0.0, 128
        %1499 = vxpose.xlu0.b32.cont [10/16] 0.0, 128
        %1500 = vxpose.xlu0.b32.cont [11/16] 0.0, 128
        %1501 = vxpose.xlu0.b32.cont [12/16] 0.0, 128
        %1502 = vxpose.xlu0.b32.cont [13/16] 0.0, 128
        %1503 = vxpose.xlu0.b32.cont [14/16] 0.0, 128
        %1504 = vxpose.xlu0.b32.cont [15/16] 0.0, 128
        %1505 = vxpose.xlu0.b32.end [16/16] 0.0, 128
        %v1506 = vpop.trf.xlu0
        %v1507 = vpop.trf.xlu0
        %v1508 = vpop.trf.xlu0
        %v1509 = vpop.trf.xlu0
        %v1510 = vpop.trf.xlu0
        %v1511 = vpop.trf.xlu0
        %v1512 = vpop.trf.xlu0
        %v1513 = vpop.trf.xlu0
        %v1514 = vpop.trf.xlu0
        %v1515 = vpop.trf.xlu0
        %v1516 = vpop.trf.xlu0
        %v1517 = vpop.trf.xlu0
        %v1518 = vpop.trf.xlu0
        %v1519 = vpop.trf.xlu0
        %v1520 = vpop.trf.xlu0
        %v1521 = vpop.trf.xlu0
        %1522 = vxpose.xlu0.b32.start [1/16] %v1484, 128
        %1523 = vxpose.xlu0.b32.cont [2/16] %v1485, 128
        %1524 = vxpose.xlu0.b32.cont [3/16] 0.0, 128
        %1525 = vxpose.xlu0.b32.cont [4/16] 0.0, 128
        %1526 = vxpose.xlu0.b32.cont [5/16] 0.0, 128
        %1527 = vxpose.xlu0.b32.cont [6/16] 0.0, 128
        %1528 = vxpose.xlu0.b32.cont [7/16] 0.0, 128
        %1529 = vxpose.xlu0.b32.cont [8/16] 0.0, 128
        %1530 = vxpose.xlu0.b32.cont [9/16] 0.0, 128
        %1531 = vxpose.xlu0.b32.cont [10/16] 0.0, 128
        %1532 = vxpose.xlu0.b32.cont [11/16] 0.0, 128
        %1533 = vxpose.xlu0.b32.cont [12/16] 0.0, 128
        %1534 = vxpose.xlu0.b32.cont [13/16] 0.0, 128
        %1535 = vxpose.xlu0.b32.cont [14/16] 0.0, 128
        %1536 = vxpose.xlu0.b32.cont [15/16] 0.0, 128
        %1537 = vxpose.xlu0.b32.end [16/16] 0.0, 128
        %v1538 = vpop.trf.xlu0
        %v1539 = vpop.trf.xlu0
        %v1540 = vpop.trf.xlu0
        %v1541 = vpop.trf.xlu0
        %v1542 = vpop.trf.xlu0
        %v1543 = vpop.trf.xlu0
        %v1544 = vpop.trf.xlu0
        %v1545 = vpop.trf.xlu0
        %v1546 = vpop.trf.xlu0
        %v1547 = vpop.trf.xlu0
        %v1548 = vpop.trf.xlu0
        %v1549 = vpop.trf.xlu0
        %v1550 = vpop.trf.xlu0
        %v1551 = vpop.trf.xlu0
        %v1552 = vpop.trf.xlu0
        %v1553 = vpop.trf.xlu0
        %1554 = vxpose.xlu0.b32.start [1/16] %v1486, 128
        %1555 = vxpose.xlu0.b32.cont [2/16] %v1487, 128
        %1556 = vxpose.xlu0.b32.cont [3/16] 0.0, 128
        %1557 = vxpose.xlu0.b32.cont [4/16] 0.0, 128
        %1558 = vxpose.xlu0.b32.cont [5/16] 0.0, 128
        %1559 = vxpose.xlu0.b32.cont [6/16] 0.0, 128
        %1560 = vxpose.xlu0.b32.cont [7/16] 0.0, 128
        %1561 = vxpose.xlu0.b32.cont [8/16] 0.0, 128
        %1562 = vxpose.xlu0.b32.cont [9/16] 0.0, 128
        %1563 = vxpose.xlu0.b32.cont [10/16] 0.0, 128
        %1564 = vxpose.xlu0.b32.cont [11/16] 0.0, 128
        %1565 = vxpose.xlu0.b32.cont [12/16] 0.0, 128
        %1566 = vxpose.xlu0.b32.cont [13/16] 0.0, 128
        %1567 = vxpose.xlu0.b32.cont [14/16] 0.0, 128
        %1568 = vxpose.xlu0.b32.cont [15/16] 0.0, 128
        %1569 = vxpose.xlu0.b32.end [16/16] 0.0, 128
        %v1570 = vpop.trf.xlu0
        %v1571 = vpop.trf.xlu0
        %v1572 = vpop.trf.xlu0
        %v1573 = vpop.trf.xlu0
        %v1574 = vpop.trf.xlu0
        %v1575 = vpop.trf.xlu0
        %v1576 = vpop.trf.xlu0
        %v1577 = vpop.trf.xlu0
        %v1578 = vpop.trf.xlu0
        %v1579 = vpop.trf.xlu0
        %v1580 = vpop.trf.xlu0
        %v1581 = vpop.trf.xlu0
        %v1582 = vpop.trf.xlu0
        %v1583 = vpop.trf.xlu0
        %v1584 = vpop.trf.xlu0
        %v1585 = vpop.trf.xlu0
        %1586 = vxpose.xlu0.b32.start [1/16] %v1488, 128
        %1587 = vxpose.xlu0.b32.cont [2/16] %v1489, 128
        %1588 = vxpose.xlu0.b32.cont [3/16] 0.0, 128
        %1589 = vxpose.xlu0.b32.cont [4/16] 0.0, 128
        %1590 = vxpose.xlu0.b32.cont [5/16] 0.0, 128
        %1591 = vxpose.xlu0.b32.cont [6/16] 0.0, 128
        %1592 = vxpose.xlu0.b32.cont [7/16] 0.0, 128
        %1593 = vxpose.xlu0.b32.cont [8/16] 0.0, 128
        %1594 = vxpose.xlu0.b32.cont [9/16] 0.0, 128
        %1595 = vxpose.xlu0.b32.cont [10/16] 0.0, 128
        %1596 = vxpose.xlu0.b32.cont [11/16] 0.0, 128
        %1597 = vxpose.xlu0.b32.cont [12/16] 0.0, 128
        %1598 = vxpose.xlu0.b32.cont [13/16] 0.0, 128
        %1599 = vxpose.xlu0.b32.cont [14/16] 0.0, 128
        %1600 = vxpose.xlu0.b32.cont [15/16] 0.0, 128
        %1601 = vxpose.xlu0.b32.end [16/16] 0.0, 128
        %v1602 = vpop.trf.xlu0
        %v1603 = vpop.trf.xlu0
        %v1604 = vpop.trf.xlu0
        %v1605 = vpop.trf.xlu0
        %v1606 = vpop.trf.xlu0
        %v1607 = vpop.trf.xlu0
        %v1608 = vpop.trf.xlu0
        %v1609 = vpop.trf.xlu0
        %v1610 = vpop.trf.xlu0
        %v1611 = vpop.trf.xlu0
        %v1612 = vpop.trf.xlu0
        %v1613 = vpop.trf.xlu0
        %v1614 = vpop.trf.xlu0
        %v1615 = vpop.trf.xlu0
        %v1616 = vpop.trf.xlu0
        %v1617 = vpop.trf.xlu0
        %v1618 = vpack.c.bf16 %v1538, %v1506
        %v1619 = vpack.c.bf16 %v1602, %v1570
        %v1620 = vld [vmem:[%s3] sm:$0xf]
        %v1621 = vld [vmem:[%s3 + $0x4] sm:$0xf]
        %v1622 = vld [vmem:[%s3 + $0x8] sm:$0xf]
        %v1623 = vld [vmem:[%s3 + $0xc] sm:$0xf]
        %v1624 = vld [vmem:[%s4] sm:$0xff]
        %v1625 = vld [vmem:[%s4 + $0x8] sm:$0xff]
        %v1626 = vld [vmem:[%s4 + $0x10] sm:$0xff]
        %v1627 = vld [vmem:[%s4 + $0x18] sm:$0xff]
        %1629 = vset.pattern.permute.xlu0 0
        %1630 = vperm.xlu0 %1629, %v1624
        %v1631 = vpop.permute.xlu0 %1630
        %1634 = vset.pattern.permute.xlu0 0
        %1635 = vperm.xlu0 %1634, %v1625
        %v1636 = vpop.permute.xlu0 %1635
        %1639 = vset.pattern.permute.xlu0 0
        %1640 = vperm.xlu0 %1639, %v1626
        %v1641 = vpop.permute.xlu0 %1640
        %1644 = vset.pattern.permute.xlu0 0
        %1645 = vperm.xlu0 %1644, %v1627
        %v1646 = vpop.permute.xlu0 %1645
        %v1652 = vunpack.c.l.b16 %v1620
        %v1653 = vunpack.c.l.b16 %v1621
        %v1654 = vunpack.c.l.b16 %v1622
        %v1655 = vunpack.c.l.b16 %v1623
        %v1656 = vpack.c.b16 %v1653, %v1652
        %v1657 = vpack.c.b16 %v1655, %v1654
        %v1659 = vsel %vm841, %v1656, 0
        %v1662 = vsel %vm841, %v1657, 0
        %1664 = vmatpush.bf16.msra.mxu0 0
        %1665 = vmatpush.bf16.msra.mxu0 0
        %1666 = vmatpush.bf16.msra.mxu0 0
        %1667 = vmatpush.bf16.msra.mxu0 0
        %1668 = vmatpush.bf16.msra.mxu0 0
        %1669 = vmatpush.bf16.msra.mxu0 0
        %1670 = vmatpush.bf16.msra.mxu0 %v1619
        %1671 = vmatpush.bf16.msra.mxu0 %v1618
        %1672 = vmatmul.bf16.gmra.mxu0 %v1659
        %v1673 = vpop.f32.mrf.mxu0
        %v1674 = vadd.f32 %v1631, %v1673
        %v1675 = vpop.f32.mrf.mxu0
        %v1676 = vadd.f32 %v1636, %v1675
        %1677 = vmatmul.bf16.gmra.mxu0 %v1662
        %v1678 = vpop.f32.mrf.mxu0
        %v1679 = vadd.f32 %v1641, %v1678
        %v1680 = vpop.f32.mrf.mxu0
        %v1681 = vadd.f32 %v1646, %v1680
        %1682 = vdwg.mxu0
        %1687 = vrot.lane.b32.xlu0 %v1674, 124
        %v1688 = vpop.permute.xlu0 %1687
        %1689 = vrot.lane.b32.xlu0 %v1676, 124
        %v1690 = vpop.permute.xlu0 %1689
        %1691 = vrot.lane.b32.xlu0 %v1679, 124
        %v1692 = vpop.permute.xlu0 %1691
        %1693 = vrot.lane.b32.xlu0 %v1681, 124
        %v1694 = vpop.permute.xlu0 %1693
        %1699 = vrot.lane.b32.xlu0 %v1674, 120
        %v1700 = vpop.permute.xlu0 %1699
        %1701 = vrot.lane.b32.xlu0 %v1676, 120
        %v1702 = vpop.permute.xlu0 %1701
        %1703 = vrot.lane.b32.xlu0 %v1679, 120
        %v1704 = vpop.permute.xlu0 %1703
        %1705 = vrot.lane.b32.xlu0 %v1681, 120
        %v1706 = vpop.permute.xlu0 %1705
        %1711 = vrot.lane.b32.xlu0 %v1674, 116
        %v1712 = vpop.permute.xlu0 %1711
        %1713 = vrot.lane.b32.xlu0 %v1676, 116
        %v1714 = vpop.permute.xlu0 %1713
        %1715 = vrot.lane.b32.xlu0 %v1679, 116
        %v1716 = vpop.permute.xlu0 %1715
        %1717 = vrot.lane.b32.xlu0 %v1681, 116
        %v1718 = vpop.permute.xlu0 %1717
        %v1723 = vrot.slane %v1700, 4
        %v1724 = vsel %vm438, %v1723, %v1674
        %v1725 = vrot.slane %v1674, 4
        %v1726 = vsel %vm438, %v1700, %v1725
        %v1728 = vunpack.c.l.s4 1983009808
        %v1729 = vunpack.c.0.s8 %v1728
        %v1730 = vperm.slane %v1724, %v1729
        %v1732 = vunpack.c.l.s4 1983009808
        %v1733 = vunpack.c.0.s8 %v1732
        %v1734 = vperm.slane %v1726, %v1733
        %v1735 = vrot.slane %v1712, 4
        %v1736 = vsel %vm438, %v1735, %v1688
        %v1737 = vrot.slane %v1688, 4
        %v1738 = vsel %vm438, %v1712, %v1737
        %v1740 = vunpack.c.l.s4 1983009808
        %v1741 = vunpack.c.0.s8 %v1740
        %v1742 = vperm.slane %v1736, %v1741
        %v1744 = vunpack.c.l.s4 1983009808
        %v1745 = vunpack.c.0.s8 %v1744
        %v1746 = vperm.slane %v1738, %v1745
        %v1747 = vrot.slane %v1742, 4
        %v1748 = vsel %vm438, %v1747, %v1730
        %v1749 = vrot.slane %v1730, 4
        %v1750 = vsel %vm438, %v1742, %v1749
        %v1752 = vunpack.c.l.s4 1934713408
        %v1753 = vunpack.c.0.s8 %v1752
        %v1754 = vperm.slane %v1748, %v1753
        %v1756 = vunpack.c.l.s4 1934713408
        %v1757 = vunpack.c.0.s8 %v1756
        %v1758 = vperm.slane %v1750, %v1757
        %v1759 = vrot.slane %v1746, 4
        %v1760 = vsel %vm438, %v1759, %v1734
        %v1761 = vrot.slane %v1734, 4
        %v1762 = vsel %vm438, %v1746, %v1761
        %v1764 = vunpack.c.l.s4 1934713408
        %v1765 = vunpack.c.0.s8 %v1764
        %v1766 = vperm.slane %v1760, %v1765
        %v1768 = vunpack.c.l.s4 1934713408
        %v1769 = vunpack.c.0.s8 %v1768
        %v1770 = vperm.slane %v1762, %v1769
        %v1771 = vrot.slane %v1754, 4
        %v1772 = vsel %vm438, 0.0, %v1771
        %v1773 = vrot.slane %v1758, 4
        %v1774 = vsel %vm438, 0.0, %v1773
        %v1775 = vrot.slane %v1766, 4
        %v1776 = vsel %vm438, 0.0, %v1775
        %v1777 = vrot.slane %v1770, 4
        %v1778 = vsel %vm438, 0.0, %v1777
        %v1779 = vrot.slane %v1702, 4
        %v1780 = vsel %vm438, %v1779, %v1676
        %v1781 = vrot.slane %v1676, 4
        %v1782 = vsel %vm438, %v1702, %v1781
        %v1784 = vunpack.c.l.s4 1983009808
        %v1785 = vunpack.c.0.s8 %v1784
        %v1786 = vperm.slane %v1780, %v1785
        %v1788 = vunpack.c.l.s4 1983009808
        %v1789 = vunpack.c.0.s8 %v1788
        %v1790 = vperm.slane %v1782, %v1789
        %v1791 = vrot.slane %v1714, 4
        %v1792 = vsel %vm438, %v1791, %v1690
        %v1793 = vrot.slane %v1690, 4
        %v1794 = vsel %vm438, %v1714, %v1793
        %v1796 = vunpack.c.l.s4 1983009808
        %v1797 = vunpack.c.0.s8 %v1796
        %v1798 = vperm.slane %v1792, %v1797
        %v1800 = vunpack.c.l.s4 1983009808
        %v1801 = vunpack.c.0.s8 %v1800
        %v1802 = vperm.slane %v1794, %v1801
        %v1803 = vrot.slane %v1798, 4
        %v1804 = vsel %vm438, %v1803, %v1786
        %v1805 = vrot.slane %v1786, 4
        %v1806 = vsel %vm438, %v1798, %v1805
        %v1808 = vunpack.c.l.s4 1934713408
        %v1809 = vunpack.c.0.s8 %v1808
        %v1810 = vperm.slane %v1804, %v1809
        %v1812 = vunpack.c.l.s4 1934713408
        %v1813 = vunpack.c.0.s8 %v1812
        %v1814 = vperm.slane %v1806, %v1813
        %v1815 = vrot.slane %v1802, 4
        %v1816 = vsel %vm438, %v1815, %v1790
        %v1817 = vrot.slane %v1790, 4
        %v1818 = vsel %vm438, %v1802, %v1817
        %v1820 = vunpack.c.l.s4 1934713408
        %v1821 = vunpack.c.0.s8 %v1820
        %v1822 = vperm.slane %v1816, %v1821
        %v1824 = vunpack.c.l.s4 1934713408
        %v1825 = vunpack.c.0.s8 %v1824
        %v1826 = vperm.slane %v1818, %v1825
        %v1827 = vrot.slane %v1810, 4
        %v1828 = vsel %vm438, 0.0, %v1827
        %v1829 = vrot.slane %v1814, 4
        %v1830 = vsel %vm438, 0.0, %v1829
        %v1831 = vrot.slane %v1822, 4
        %v1832 = vsel %vm438, 0.0, %v1831
        %v1833 = vrot.slane %v1826, 4
        %v1834 = vsel %vm438, 0.0, %v1833
        %v1835 = vrot.slane %v1704, 4
        %v1836 = vsel %vm438, %v1835, %v1679
        %v1837 = vrot.slane %v1679, 4
        %v1838 = vsel %vm438, %v1704, %v1837
        %v1840 = vunpack.c.l.s4 1983009808
        %v1841 = vunpack.c.0.s8 %v1840
        %v1842 = vperm.slane %v1836, %v1841
        %v1844 = vunpack.c.l.s4 1983009808
        %v1845 = vunpack.c.0.s8 %v1844
        %v1846 = vperm.slane %v1838, %v1845
        %v1847 = vrot.slane %v1716, 4
        %v1848 = vsel %vm438, %v1847, %v1692
        %v1849 = vrot.slane %v1692, 4
        %v1850 = vsel %vm438, %v1716, %v1849
        %v1852 = vunpack.c.l.s4 1983009808
        %v1853 = vunpack.c.0.s8 %v1852
        %v1854 = vperm.slane %v1848, %v1853
        %v1856 = vunpack.c.l.s4 1983009808
        %v1857 = vunpack.c.0.s8 %v1856
        %v1858 = vperm.slane %v1850, %v1857
        %v1859 = vrot.slane %v1854, 4
        %v1860 = vsel %vm438, %v1859, %v1842
        %v1861 = vrot.slane %v1842, 4
        %v1862 = vsel %vm438, %v1854, %v1861
        %v1864 = vunpack.c.l.s4 1934713408
        %v1865 = vunpack.c.0.s8 %v1864
        %v1866 = vperm.slane %v1860, %v1865
        %v1868 = vunpack.c.l.s4 1934713408
        %v1869 = vunpack.c.0.s8 %v1868
        %v1870 = vperm.slane %v1862, %v1869
        %v1871 = vrot.slane %v1858, 4
        %v1872 = vsel %vm438, %v1871, %v1846
        %v1873 = vrot.slane %v1846, 4
        %v1874 = vsel %vm438, %v1858, %v1873
        %v1876 = vunpack.c.l.s4 1934713408
        %v1877 = vunpack.c.0.s8 %v1876
        %v1878 = vperm.slane %v1872, %v1877
        %v1880 = vunpack.c.l.s4 1934713408
        %v1881 = vunpack.c.0.s8 %v1880
        %v1882 = vperm.slane %v1874, %v1881
        %v1883 = vrot.slane %v1866, 4
        %v1884 = vsel %vm438, 0.0, %v1883
        %v1885 = vrot.slane %v1870, 4
        %v1886 = vsel %vm438, 0.0, %v1885
        %v1887 = vrot.slane %v1878, 4
        %v1888 = vsel %vm438, 0.0, %v1887
        %v1889 = vrot.slane %v1882, 4
        %v1890 = vsel %vm438, 0.0, %v1889
        %v1891 = vrot.slane %v1706, 4
        %v1892 = vsel %vm438, %v1891, %v1681
        %v1893 = vrot.slane %v1681, 4
        %v1894 = vsel %vm438, %v1706, %v1893
        %v1896 = vunpack.c.l.s4 1983009808
        %v1897 = vunpack.c.0.s8 %v1896
        %v1898 = vperm.slane %v1892, %v1897
        %v1900 = vunpack.c.l.s4 1983009808
        %v1901 = vunpack.c.0.s8 %v1900
        %v1902 = vperm.slane %v1894, %v1901
        %v1903 = vrot.slane %v1718, 4
        %v1904 = vsel %vm438, %v1903, %v1694
        %v1905 = vrot.slane %v1694, 4
        %v1906 = vsel %vm438, %v1718, %v1905
        %v1908 = vunpack.c.l.s4 1983009808
        %v1909 = vunpack.c.0.s8 %v1908
        %v1910 = vperm.slane %v1904, %v1909
        %v1912 = vunpack.c.l.s4 1983009808
        %v1913 = vunpack.c.0.s8 %v1912
        %v1914 = vperm.slane %v1906, %v1913
        %v1915 = vrot.slane %v1910, 4
        %v1916 = vsel %vm438, %v1915, %v1898
        %v1917 = vrot.slane %v1898, 4
        %v1918 = vsel %vm438, %v1910, %v1917
        %v1920 = vunpack.c.l.s4 1934713408
        %v1921 = vunpack.c.0.s8 %v1920
        %v1922 = vperm.slane %v1916, %v1921
        %v1924 = vunpack.c.l.s4 1934713408
        %v1925 = vunpack.c.0.s8 %v1924
        %v1926 = vperm.slane %v1918, %v1925
        %v1927 = vrot.slane %v1914, 4
        %v1928 = vsel %vm438, %v1927, %v1902
        %v1929 = vrot.slane %v1902, 4
        %v1930 = vsel %vm438, %v1914, %v1929
        %v1932 = vunpack.c.l.s4 1934713408
        %v1933 = vunpack.c.0.s8 %v1932
        %v1934 = vperm.slane %v1928, %v1933
        %v1936 = vunpack.c.l.s4 1934713408
        %v1937 = vunpack.c.0.s8 %v1936
        %v1938 = vperm.slane %v1930, %v1937
        %v1939 = vrot.slane %v1922, 4
        %v1940 = vsel %vm438, 0.0, %v1939
        %v1941 = vrot.slane %v1926, 4
        %v1942 = vsel %vm438, 0.0, %v1941
        %v1943 = vrot.slane %v1934, 4
        %v1944 = vsel %vm438, 0.0, %v1943
        %v1945 = vrot.slane %v1938, 4
        %v1946 = vsel %vm438, 0.0, %v1945
        %vm1947 = vcmask 27648
        %1948 = vst.msk [vmem:[%s403] sm:$0xf] %vm1947, %v1754
        %1949 = vst.msk [vmem:[%s403 + $0x4] sm:$0xf] %vm1947, %v1772
        %1950 = vst.msk [vmem:[%s403 + $0x8] sm:$0xf] %vm1947, %v1758
        %1951 = vst.msk [vmem:[%s403 + $0xc] sm:$0xf] %vm1947, %v1774
        %1952 = vst.msk [vmem:[%s403 + $0x10] sm:$0xf] %vm1947, %v1766
        %1953 = vst.msk [vmem:[%s403 + $0x14] sm:$0xf] %vm1947, %v1776
        %1954 = vst.msk [vmem:[%s403 + $0x18] sm:$0xf] %vm1947, %v1770
        %1955 = vst.msk [vmem:[%s403 + $0x1c] sm:$0xf] %vm1947, %v1778
        %1956 = vst.msk [vmem:[%s403 + $0x20] sm:$0xf] %vm1947, %v1810
        %1957 = vst.msk [vmem:[%s403 + $0x24] sm:$0xf] %vm1947, %v1828
        %1958 = vst.msk [vmem:[%s403 + $0x28] sm:$0xf] %vm1947, %v1814
        %1959 = vst.msk [vmem:[%s403 + $0x2c] sm:$0xf] %vm1947, %v1830
        %1960 = vst.msk [vmem:[%s403 + $0x30] sm:$0xf] %vm1947, %v1822
        %1961 = vst.msk [vmem:[%s403 + $0x34] sm:$0xf] %vm1947, %v1832
        %1962 = vst.msk [vmem:[%s403 + $0x38] sm:$0xf] %vm1947, %v1826
        %1963 = vst.msk [vmem:[%s403 + $0x3c] sm:$0xf] %vm1947, %v1834
        %1964 = vst.msk [vmem:[%s403 + $0x40] sm:$0xf] %vm1947, %v1866
        %1965 = vst.msk [vmem:[%s403 + $0x44] sm:$0xf] %vm1947, %v1884
        %1966 = vst.msk [vmem:[%s403 + $0x48] sm:$0xf] %vm1947, %v1870
        %1967 = vst.msk [vmem:[%s403 + $0x4c] sm:$0xf] %vm1947, %v1886
        %1968 = vst.msk [vmem:[%s403 + $0x50] sm:$0xf] %vm1947, %v1878
        %1969 = vst.msk [vmem:[%s403 + $0x54] sm:$0xf] %vm1947, %v1888
        %1970 = vst.msk [vmem:[%s403 + $0x58] sm:$0xf] %vm1947, %v1882
        %1971 = vst.msk [vmem:[%s403 + $0x5c] sm:$0xf] %vm1947, %v1890
        %1972 = vst.msk [vmem:[%s403 + $0x60] sm:$0xf] %vm1947, %v1922
        %1973 = vst.msk [vmem:[%s403 + $0x64] sm:$0xf] %vm1947, %v1940
        %1974 = vst.msk [vmem:[%s403 + $0x68] sm:$0xf] %vm1947, %v1926
        %1975 = vst.msk [vmem:[%s403 + $0x6c] sm:$0xf] %vm1947, %v1942
        %1976 = vst.msk [vmem:[%s403 + $0x70] sm:$0xf] %vm1947, %v1934
        %1977 = vst.msk [vmem:[%s403 + $0x74] sm:$0xf] %vm1947, %v1944
        %1978 = vst.msk [vmem:[%s403 + $0x78] sm:$0xf] %vm1947, %v1938
        %1979 = vst.msk [vmem:[%s403 + $0x7c] sm:$0xf] %vm1947, %v1946
        %s1980 = sand.u32 %s150, 1
        %s1981 = sand.u32 %s150, 1
        %s1982 = smul.addr %s1981, 128
        %s1983 = scalar_lea.vmem [#allocation5], %s1982
        // Predicated region
        $region82: #{tpu_custom_call.1} parent=76 // pred_check
          %p1984 = pneg %p160
        $region83: #{tpu_custom_call.1} parent=76 // pred_check_branch
          %1986 = sbr.rel (%p1984) target = $region85
        $region84: #{tpu_custom_call.1} parent=76 // pred_region
          %s1987 = smul.addr %s20, 64
          %s1988 = sadd.s32 %s21, %s1987
          %s1989 = smul.addr %s1988, 4
          %s1990 = scalar_lea.vmem %s5, %s1989
          // Predicated region
          $region86: #{tpu_custom_call.1} parent=84 // pred_check
            _
          $region87: #{tpu_custom_call.1} parent=84 // pred_check_branch
            %1992 = sbr.rel (0) target = $region89
          $region88: #{tpu_custom_call.1} parent=84 // pred_region
            // Predicated region
            $region90: #{tpu_custom_call.1} parent=88 // pred_check
              _
            $region91: #{tpu_custom_call.1} parent=88 // pred_check_branch
              %1994 = sbr.rel target = $region93
            $region92: #{tpu_custom_call.1} parent=88 // pred_region
              // Predicated region
              $region105: #{tpu_custom_call.1} parent=92 // pred_check
                _
              $region106: #{tpu_custom_call.1} parent=92 // pred_check_branch
                %2072 = sbr.rel (0) target = $region108
              $region107: #{tpu_custom_call.1} parent=92 // pred_region
                loop: start=0, step=1, limit=1
                $region109: #{tpu_custom_call.1} parent=107 // loop_pre_header
                  _
                $region110: #{tpu_custom_call.1} parent=107 // loop_header
                  %s2074 = sphi 0, %s2078
                  %p2075 = scmp.ge.s32.totalorder %s2074, 1
                  %s2079 = sphi %s1983, %s1983
                  %s2080 = sphi %s1990, %s1990
                $region111: #{tpu_custom_call.1} parent=107 // loop_header_branch
                  %2077 = sbr.rel (%p2075) target = $region115
                $region112: #{tpu_custom_call.1} parent=107 // loop_body
                  _
                $region113: #{tpu_custom_call.1} parent=107 // loop_footer
                  %s2078 = sadd.s32 1, %s2074
                $region114: #{tpu_custom_call.1} parent=107 // loop_footer_branch
                  %2073 = sbr.rel target = $region110
                $region115: #{tpu_custom_call.1} parent=107 // loop_exit
                  _
                %s2082 = ssub.s32 16, 1
                loop: start=0, step=1, limit=1
                $region116: #{tpu_custom_call.1} parent=107 // loop_pre_header
                  _
                $region117: #{tpu_custom_call.1} parent=107 // loop_header
                  %s2084 = sphi 0, %s2088
                  %p2085 = scmp.ge.s32.totalorder %s2084, 1
                  %s2089 = sphi %s1983, %s1983
                  %s2090 = sphi %s1990, %s1990
                $region118: #{tpu_custom_call.1} parent=107 // loop_header_branch
                  %2087 = sbr.rel (%p2085) target = $region122
                $region119: #{tpu_custom_call.1} parent=107 // loop_body
                  %v2091 = vld [vmem:[%s2089] sm:%s2082]
                  %2092 = vst [vmem:[%s2090] sm:%s2082] %v2091
                  %v2093 = vld [vmem:[%s2089 + $0x4] sm:%s2082]
                  %2094 = vst [vmem:[%s2090 + $0x8] sm:%s2082] %v2093
                  %v2095 = vld [vmem:[%s2089 + $0x8] sm:%s2082]
                  %2096 = vst [vmem:[%s2090 + $0x10] sm:%s2082] %v2095
                  %v2097 = vld [vmem:[%s2089 + $0xc] sm:%s2082]
                  %2098 = vst [vmem:[%s2090 + $0x18] sm:%s2082] %v2097
                  %v2099 = vld [vmem:[%s2089 + $0x10] sm:%s2082]
                  %2100 = vst [vmem:[%s2090 + $0x20] sm:%s2082] %v2099
                  %v2101 = vld [vmem:[%s2089 + $0x14] sm:%s2082]
                  %2102 = vst [vmem:[%s2090 + $0x28] sm:%s2082] %v2101
                  %v2103 = vld [vmem:[%s2089 + $0x18] sm:%s2082]
                  %2104 = vst [vmem:[%s2090 + $0x30] sm:%s2082] %v2103
                  %v2105 = vld [vmem:[%s2089 + $0x1c] sm:%s2082]
                  %2106 = vst [vmem:[%s2090 + $0x38] sm:%s2082] %v2105
                  %v2107 = vld [vmem:[%s2089 + $0x20] sm:%s2082]
                  %2108 = vst [vmem:[%s2090 + $0x40] sm:%s2082] %v2107
                  %v2109 = vld [vmem:[%s2089 + $0x24] sm:%s2082]
                  %2110 = vst [vmem:[%s2090 + $0x48] sm:%s2082] %v2109
                  %v2111 = vld [vmem:[%s2089 + $0x28] sm:%s2082]
                  %2112 = vst [vmem:[%s2090 + $0x50] sm:%s2082] %v2111
                  %v2113 = vld [vmem:[%s2089 + $0x2c] sm:%s2082]
                  %2114 = vst [vmem:[%s2090 + $0x58] sm:%s2082] %v2113
                  %v2115 = vld [vmem:[%s2089 + $0x30] sm:%s2082]
                  %2116 = vst [vmem:[%s2090 + $0x60] sm:%s2082] %v2115
                  %v2117 = vld [vmem:[%s2089 + $0x34] sm:%s2082]
                  %2118 = vst [vmem:[%s2090 + $0x68] sm:%s2082] %v2117
                  %v2119 = vld [vmem:[%s2089 + $0x38] sm:%s2082]
                  %2120 = vst [vmem:[%s2090 + $0x70] sm:%s2082] %v2119
                  %v2121 = vld [vmem:[%s2089 + $0x3c] sm:%s2082]
                  %2122 = vst [vmem:[%s2090 + $0x78] sm:%s2082] %v2121
                  %v2123 = vld [vmem:[%s2089 + $0x40] sm:%s2082]
                  %2124 = vst [vmem:[%s2090 + $0x80] sm:%s2082] %v2123
                  %v2125 = vld [vmem:[%s2089 + $0x44] sm:%s2082]
                  %2126 = vst [vmem:[%s2090 + $0x88] sm:%s2082] %v2125
                  %v2127 = vld [vmem:[%s2089 + $0x48] sm:%s2082]
                  %2128 = vst [vmem:[%s2090 + $0x90] sm:%s2082] %v2127
                  %v2129 = vld [vmem:[%s2089 + $0x4c] sm:%s2082]
                  %2130 = vst [vmem:[%s2090 + $0x98] sm:%s2082] %v2129
                  %v2131 = vld [vmem:[%s2089 + $0x50] sm:%s2082]
                  %2132 = vst [vmem:[%s2090 + $0xa0] sm:%s2082] %v2131
                  %v2133 = vld [vmem:[%s2089 + $0x54] sm:%s2082]
                  %2134 = vst [vmem:[%s2090 + $0xa8] sm:%s2082] %v2133
                  %v2135 = vld [vmem:[%s2089 + $0x58] sm:%s2082]
                  %2136 = vst [vmem:[%s2090 + $0xb0] sm:%s2082] %v2135
                  %v2137 = vld [vmem:[%s2089 + $0x5c] sm:%s2082]
                  %2138 = vst [vmem:[%s2090 + $0xb8] sm:%s2082] %v2137
                  %v2139 = vld [vmem:[%s2089 + $0x60] sm:%s2082]
                  %2140 = vst [vmem:[%s2090 + $0xc0] sm:%s2082] %v2139
                  %v2141 = vld [vmem:[%s2089 + $0x64] sm:%s2082]
                  %2142 = vst [vmem:[%s2090 + $0xc8] sm:%s2082] %v2141
                  %v2143 = vld [vmem:[%s2089 + $0x68] sm:%s2082]
                  %2144 = vst [vmem:[%s2090 + $0xd0] sm:%s2082] %v2143
                  %v2145 = vld [vmem:[%s2089 + $0x6c] sm:%s2082]
                  %2146 = vst [vmem:[%s2090 + $0xd8] sm:%s2082] %v2145
                  %v2147 = vld [vmem:[%s2089 + $0x70] sm:%s2082]
                  %2148 = vst [vmem:[%s2090 + $0xe0] sm:%s2082] %v2147
                  %v2149 = vld [vmem:[%s2089 + $0x74] sm:%s2082]
                  %2150 = vst [vmem:[%s2090 + $0xe8] sm:%s2082] %v2149
                  %v2151 = vld [vmem:[%s2089 + $0x78] sm:%s2082]
                  %2152 = vst [vmem:[%s2090 + $0xf0] sm:%s2082] %v2151
                  %v2153 = vld [vmem:[%s2089 + $0x7c] sm:%s2082]
                  %2154 = vst [vmem:[%s2090 + $0xf8] sm:%s2082] %v2153
                $region120: #{tpu_custom_call.1} parent=107 // loop_footer
                  %s2088 = sadd.s32 1, %s2084
                $region121: #{tpu_custom_call.1} parent=107 // loop_footer_branch
                  %2083 = sbr.rel target = $region117
                $region122: #{tpu_custom_call.1} parent=107 // loop_exit
                  _
              $region108: #{tpu_custom_call.1} parent=92 // pred_fallthru
                _
            $region93: #{tpu_custom_call.1} parent=88 // pred_fallthru
              _
            // Predicated region
            $region94: #{tpu_custom_call.1} parent=88 // pred_check
              _
            $region95: #{tpu_custom_call.1} parent=88 // pred_check_branch
              %1996 = sbr.rel (0) target = $region97
            $region96: #{tpu_custom_call.1} parent=88 // pred_region
              %s1998 = ssub.s32 16, 1
              loop: start=0, step=1, limit=1
              $region98: #{tpu_custom_call.1} parent=96 // loop_pre_header
                _
              $region99: #{tpu_custom_call.1} parent=96 // loop_header
                %s2000 = sphi 0, %s2004
                %p2001 = scmp.ge.s32.totalorder %s2000, 1
                %s2005 = sphi %s1983, %s1983
                %s2006 = sphi %s1990, %s1990
              $region100: #{tpu_custom_call.1} parent=96 // loop_header_branch
                %2003 = sbr.rel (%p2001) target = $region104
              $region101: #{tpu_custom_call.1} parent=96 // loop_body
                %v2007 = vld [vmem:[%s2005] sm:%s1998]
                %2008 = vst [vmem:[%s2006] sm:%s1998] %v2007
                %v2009 = vld [vmem:[%s2005 + $0x4] sm:%s1998]
                %2010 = vst [vmem:[%s2006 + $0x8] sm:%s1998] %v2009
                %v2011 = vld [vmem:[%s2005 + $0x8] sm:%s1998]
                %2012 = vst [vmem:[%s2006 + $0x10] sm:%s1998] %v2011
                %v2013 = vld [vmem:[%s2005 + $0xc] sm:%s1998]
                %2014 = vst [vmem:[%s2006 + $0x18] sm:%s1998] %v2013
                %v2015 = vld [vmem:[%s2005 + $0x10] sm:%s1998]
                %2016 = vst [vmem:[%s2006 + $0x20] sm:%s1998] %v2015
                %v2017 = vld [vmem:[%s2005 + $0x14] sm:%s1998]
                %2018 = vst [vmem:[%s2006 + $0x28] sm:%s1998] %v2017
                %v2019 = vld [vmem:[%s2005 + $0x18] sm:%s1998]
                %2020 = vst [vmem:[%s2006 + $0x30] sm:%s1998] %v2019
                %v2021 = vld [vmem:[%s2005 + $0x1c] sm:%s1998]
                %2022 = vst [vmem:[%s2006 + $0x38] sm:%s1998] %v2021
                %v2023 = vld [vmem:[%s2005 + $0x20] sm:%s1998]
                %2024 = vst [vmem:[%s2006 + $0x40] sm:%s1998] %v2023
                %v2025 = vld [vmem:[%s2005 + $0x24] sm:%s1998]
                %2026 = vst [vmem:[%s2006 + $0x48] sm:%s1998] %v2025
                %v2027 = vld [vmem:[%s2005 + $0x28] sm:%s1998]
                %2028 = vst [vmem:[%s2006 + $0x50] sm:%s1998] %v2027
                %v2029 = vld [vmem:[%s2005 + $0x2c] sm:%s1998]
                %2030 = vst [vmem:[%s2006 + $0x58] sm:%s1998] %v2029
                %v2031 = vld [vmem:[%s2005 + $0x30] sm:%s1998]
                %2032 = vst [vmem:[%s2006 + $0x60] sm:%s1998] %v2031
                %v2033 = vld [vmem:[%s2005 + $0x34] sm:%s1998]
                %2034 = vst [vmem:[%s2006 + $0x68] sm:%s1998] %v2033
                %v2035 = vld [vmem:[%s2005 + $0x38] sm:%s1998]
                %2036 = vst [vmem:[%s2006 + $0x70] sm:%s1998] %v2035
                %v2037 = vld [vmem:[%s2005 + $0x3c] sm:%s1998]
                %2038 = vst [vmem:[%s2006 + $0x78] sm:%s1998] %v2037
                %v2039 = vld [vmem:[%s2005 + $0x40] sm:%s1998]
                %2040 = vst [vmem:[%s2006 + $0x80] sm:%s1998] %v2039
                %v2041 = vld [vmem:[%s2005 + $0x44] sm:%s1998]
                %2042 = vst [vmem:[%s2006 + $0x88] sm:%s1998] %v2041
                %v2043 = vld [vmem:[%s2005 + $0x48] sm:%s1998]
                %2044 = vst [vmem:[%s2006 + $0x90] sm:%s1998] %v2043
                %v2045 = vld [vmem:[%s2005 + $0x4c] sm:%s1998]
                %2046 = vst [vmem:[%s2006 + $0x98] sm:%s1998] %v2045
                %v2047 = vld [vmem:[%s2005 + $0x50] sm:%s1998]
                %2048 = vst [vmem:[%s2006 + $0xa0] sm:%s1998] %v2047
                %v2049 = vld [vmem:[%s2005 + $0x54] sm:%s1998]
                %2050 = vst [vmem:[%s2006 + $0xa8] sm:%s1998] %v2049
                %v2051 = vld [vmem:[%s2005 + $0x58] sm:%s1998]
                %2052 = vst [vmem:[%s2006 + $0xb0] sm:%s1998] %v2051
                %v2053 = vld [vmem:[%s2005 + $0x5c] sm:%s1998]
                %2054 = vst [vmem:[%s2006 + $0xb8] sm:%s1998] %v2053
                %v2055 = vld [vmem:[%s2005 + $0x60] sm:%s1998]
                %2056 = vst [vmem:[%s2006 + $0xc0] sm:%s1998] %v2055
                %v2057 = vld [vmem:[%s2005 + $0x64] sm:%s1998]
                %2058 = vst [vmem:[%s2006 + $0xc8] sm:%s1998] %v2057
                %v2059 = vld [vmem:[%s2005 + $0x68] sm:%s1998]
                %2060 = vst [vmem:[%s2006 + $0xd0] sm:%s1998] %v2059
                %v2061 = vld [vmem:[%s2005 + $0x6c] sm:%s1998]
                %2062 = vst [vmem:[%s2006 + $0xd8] sm:%s1998] %v2061
                %v2063 = vld [vmem:[%s2005 + $0x70] sm:%s1998]
                %2064 = vst [vmem:[%s2006 + $0xe0] sm:%s1998] %v2063
                %v2065 = vld [vmem:[%s2005 + $0x74] sm:%s1998]
                %2066 = vst [vmem:[%s2006 + $0xe8] sm:%s1998] %v2065
                %v2067 = vld [vmem:[%s2005 + $0x78] sm:%s1998]
                %2068 = vst [vmem:[%s2006 + $0xf0] sm:%s1998] %v2067
                %v2069 = vld [vmem:[%s2005 + $0x7c] sm:%s1998]
                %2070 = vst [vmem:[%s2006 + $0xf8] sm:%s1998] %v2069
              $region102: #{tpu_custom_call.1} parent=96 // loop_footer
                %s2004 = sadd.s32 1, %s2000
              $region103: #{tpu_custom_call.1} parent=96 // loop_footer_branch
                %1999 = sbr.rel target = $region99
              $region104: #{tpu_custom_call.1} parent=96 // loop_exit
                _
            $region97: #{tpu_custom_call.1} parent=88 // pred_fallthru
              _
          $region89: #{tpu_custom_call.1} parent=84 // pred_fallthru
            _
          %2155 = vnop
        $region85: #{tpu_custom_call.1} parent=76 // pred_fallthru
          _
      $region77: #{tpu_custom_call.1} parent=5 // pred_fallthru
        _
      %p2156 = scmp.le.s32.totalorder 2, %s11
      // Predicated region
      $region123: #{tpu_custom_call.1} parent=5 // pred_check
        %p2157 = pneg %p2156
      $region124: #{tpu_custom_call.1} parent=5 // pred_check_branch
        %2159 = sbr.rel (%p2157) target = $region126
      $region125: #{tpu_custom_call.1} parent=5 // pred_region
        %s2160 = ssub.s32 %s11, 2
        // Predicated region
        $region127: #{tpu_custom_call.1} parent=125 // pred_check
          %p2161 = pneg %p166
        $region128: #{tpu_custom_call.1} parent=125 // pred_check_branch
          %2163 = sbr.rel (%p2161) target = $region130
        $region129: #{tpu_custom_call.1} parent=125 // pred_region
          %s2164 = sand.u32 %s151, 1
          %s2165 = sand.u32 %s151, 1
          %s2166 = smul.addr %s2165, 128
          %s2167 = scalar_lea.vmem [#allocation5], %s2166
        $region130: #{tpu_custom_call.1} parent=125 // pred_fallthru
          _
      $region126: #{tpu_custom_call.1} parent=5 // pred_fallthru
        _
    $region6: #{tpu_custom_call.1} parent=1 // loop_footer
      %s15 = sadd.s32 1, %s11
    $region7: #{tpu_custom_call.1} parent=1 // loop_footer_branch
      %10 = sbr.rel target = $region3
    $region8: #{tpu_custom_call.1} parent=1 // loop_exit
      _

</llo_original>
